<compile_context>
chip_gen: v6e
topology: v6e:2x2x1
jax: 0.10.0
libtpu: 0.0.40
codegen_flags: <defaults>
</compile_context>

<pallas_src>
import jax
import jax.numpy as jnp
from jax.experimental import pallas as pl
from jax.experimental.pallas import tpu as pltpu


def _round_up(n, m):
    return ((n + m - 1) // m) * m


def _cdiv(a, b):
    return -(-a // b)


def _mlp_kernel(x_ref, y_ref, w1x_ref, w1y_ref, b1_ref, w2_ref, b2_ref,
                w3_ref, b3_ref, out_ref):
    # Layer 1: split-weight linear (== concat(x, y) @ W1) + bias + ReLU (f32 accum).
    h = jnp.dot(x_ref[...], w1x_ref[...], preferred_element_type=jnp.float32)
    h = h + jnp.dot(y_ref[...], w1y_ref[...], preferred_element_type=jnp.float32)
    h = jnp.maximum(h + b1_ref[...], 0.0)
    # Layer 2: Linear + bias + ReLU.
    h = jnp.dot(h.astype(w2_ref.dtype), w2_ref[...],
                preferred_element_type=jnp.float32)
    h = jnp.maximum(h + b2_ref[...], 0.0)
    # Layer 3: Linear + bias.
    o = jnp.dot(h.astype(w3_ref.dtype), w3_ref[...],
                preferred_element_type=jnp.float32)
    out_ref[...] = (o + b3_ref[...]).astype(out_ref.dtype)


def prepare_params(params, input_dim_x, *, compute_dtype=jnp.float32):
    """One-time weight prep (hoisted out of the hot forward path).

    Splits W1 into x/y halves (avoids concatenating the inputs), casts matmul weights
    to compute_dtype (bf16 recommended on all generations; accumulation stays f32),
    reshapes biases to (1, F) broadcast rows, and pads the output feature dim to a
    multiple of 128 only when the padding waste is small.
    """
    w1, b1, w2, b2, w3, b3 = params
    Dx = input_dim_x
    H = w1.shape[1]
    R = w3.shape[1]

    # Output lane handling: lane-dense stores only pay off when padding waste <= 1/8.
    R128 = _round_up(R, 128)
    if R % 128 != 0 and (R128 - R) * 8 <= R128:
        w3 = jnp.pad(w3, ((0, 0), (0, R128 - R)))
        b3 = jnp.pad(b3, ((0, R128 - R),))
        R_out = R128
    else:
        R_out = R

    cd = jnp.dtype(compute_dtype)
    return dict(
        w1x=w1[:Dx, :].astype(cd),
        w1y=w1[Dx:, :].astype(cd),
        b1=b1.astype(jnp.float32).reshape(1, H),
        w2=w2.astype(cd),
        b2=b2.astype(jnp.float32).reshape(1, H),
        w3=w3.astype(cd),
        b3=b3.astype(jnp.float32).reshape(1, R_out),
        r_dim=int(R),
        r_out=int(R_out),
        hidden=int(H),
        compute_dtype=cd,
    )


def _vmem_footprint(rt, Dx, Dy, H, R_out, act_bytes, w_bytes, out_bytes):
    """Approximate VMEM bytes, using lane(128)/sublane-padded tile footprints."""
    def tile(r, c, b):
        sub = {4: 8, 2: 16, 1: 32}.get(b, 8)
        return _round_up(max(r, 1), sub) * _round_up(max(c, 1), 128) * b

    io = 2 * (tile(rt, Dx, act_bytes) + tile(rt, Dy, act_bytes))   # double-buffered inputs
    io += 2 * tile(rt, R_out, out_bytes)                           # double-buffered output
    w = (tile(Dx, H, w_bytes) + tile(Dy, H, w_bytes)
         + tile(H, H, w_bytes) + tile(H, R_out, w_bytes))          # single-buffered weights
    b = 2 * tile(1, H, 4) + tile(1, R_out, 4)
    live = 2 * tile(rt, H, 4) + tile(rt, R_out, 4)                 # f32 intermediates
    return io + w + b + live


def np_encoder_forward(x, y, prepped, *, row_tile=2048, out_dtype=None,
                       min_grid_steps=2, vmem_budget_bytes=48 << 20):
    """x: (B, P, Dx), y: (B, P, Dy). Returns (B, P, r_dim).

    row_tile: target rows (points) per grid step (auto-shrunk to fit the VMEM budget).
    min_grid_steps: keep >=2 steps when possible so both v7x TensorCores get work.
    """
    B, P, Dx = x.shape
    Dy = y.shape[-1]
    H = prepped["hidden"]
    R = prepped["r_dim"]
    R_out = prepped["r_out"]
    cd = prepped["compute_dtype"]
    out_dtype = x.dtype if out_dtype is None else out_dtype

    N = B * P
    x2 = x.reshape(N, Dx)
    y2 = y.reshape(N, Dy)
    if x2.dtype != cd:
        x2 = x2.astype(cd)
    if y2.dtype != cd:
        y2 = y2.astype(cd)

    act_bytes = cd.itemsize
    out_bytes = jnp.dtype(out_dtype).itemsize
    row_align = {4: 8, 2: 16, 1: 32}.get(act_bytes, 8)

    # Row tiling: derive the tile from the row count so wrapper-side padding is tiny
    # (<= row_align-1 rows per tile) instead of padding N up to a full row_tile multiple.
    N8 = _round_up(N, row_align)
    nt = max(_cdiv(N8, row_tile), min(min_grid_steps, N8 // row_align))
    rt = _round_up(_cdiv(N8, nt), row_align)
    # Shrink the tile until the VMEM plan fits the budget (v7x has only 64 MiB/TC).
    while (_vmem_footprint(rt, Dx, Dy, H, R_out, act_bytes, act_bytes, out_bytes)
           > vmem_budget_bytes and rt > 2 * row_align):
        nt *= 2
        rt = _round_up(_cdiv(N8, nt), row_align)
    N_pad = nt * rt
    if N_pad != N:
        x2 = jnp.pad(x2, ((0, N_pad - N), (0, 0)))
        y2 = jnp.pad(y2, ((0, N_pad - N), (0, 0)))

    footprint = _vmem_footprint(rt, Dx, Dy, H, R_out, act_bytes, act_bytes, out_bytes)
    vmem_limit = int(min(max(footprint * 3 // 2 + (4 << 20), 32 << 20),
                         vmem_budget_bytes + (8 << 20)))

    def _in_specs(weight_mode):
        wkw = {} if weight_mode is None else {"pipeline_mode": weight_mode}
        return [
            pl.BlockSpec((rt, Dx), lambda i: (i, 0)),              # x rows (streamed)
            pl.BlockSpec((rt, Dy), lambda i: (i, 0)),              # y rows (streamed)
            pl.BlockSpec((Dx, H), lambda i: (0, 0), **wkw),        # W1x (resident)
            pl.BlockSpec((Dy, H), lambda i: (0, 0), **wkw),        # W1y (resident)
            pl.BlockSpec((1, H), lambda i: (0, 0), **wkw),         # b1
            pl.BlockSpec((H, H), lambda i: (0, 0), **wkw),         # W2
            pl.BlockSpec((1, H), lambda i: (0, 0), **wkw),         # b2
            pl.BlockSpec((H, R_out), lambda i: (0, 0), **wkw),     # W3
            pl.BlockSpec((1, R_out), lambda i: (0, 0), **wkw),     # b3
        ]

    def _run(weight_mode):
        return pl.pallas_call(
            _mlp_kernel,
            out_shape=jax.ShapeDtypeStruct((N_pad, R_out), out_dtype),
            grid_spec=pltpu.PrefetchScalarGridSpec(
                num_scalar_prefetch=0,
                grid=(nt,),
                in_specs=_in_specs(weight_mode),
                out_specs=pl.BlockSpec((rt, R_out), lambda i: (i, 0)),
            ),
            compiler_params=pltpu.CompilerParams(
                dimension_semantics=("parallel",),
                vmem_limit_bytes=vmem_limit,
            ),
        )(x2, y2, prepped["w1x"], prepped["w1y"], prepped["b1"],
          prepped["w2"], prepped["b2"], prepped["w3"], prepped["b3"])

    try:
        # Single-buffer the resident (never re-fetched) weights/biases -> less VMEM,
        # which is what allows the bigger row tiles above.
        out = _run(pl.Buffered(buffer_count=1))
    except Exception:
        # Fallback for jax versions that reject pipeline_mode / buffer_count=1.
        out = _run(None)

    return out[:N, :R].reshape(B, P, R)


def init_params(key, input_dim_x, input_dim_y, hidden_dim, r_dim, dtype=jnp.float32):
    """Deterministic PyTorch-style (Kaiming-uniform-ish) init for the 3 Linear layers."""
    din = input_dim_x + input_dim_y
    ks = jax.random.split(key, 6)

    def lin(kw, kb, fan_in, fan_out):
        bound = 1.0 / (fan_in ** 0.5)
        w = jax.random.uniform(kw, (fan_in, fan_out), dtype, -bound, bound)
        b = jax.random.uniform(kb, (fan_out,), dtype, -bound, bound)
        return w, b

    w1, b1 = lin(ks[0], ks[1], din, hidden_dim)
    w2, b2 = lin(ks[2], ks[3], hidden_dim, hidden_dim)
    w3, b3 = lin(ks[4], ks[5], hidden_dim, r_dim)
    return (w1, b1, w2, b2, w3, b3)


def np_encoder_ref(x, y, params):
    w1, b1, w2, b2, w3, b3 = params
    xy = jnp.concatenate([x, y], axis=-1)
    h = jnp.maximum(xy @ w1 + b1, 0.0)
    h = jnp.maximum(h @ w2 + b2, 0.0)
    return h @ w3 + b3


if __name__ == "__main__":
    # Small shapes consistent with the NP encoder: batch=2, context points=8,
    # input_dim_x=4, input_dim_y=2, hidden_dim=32, r_dim=16.
    B, P = 2, 8
    input_dim_x, input_dim_y, hidden_dim, r_dim = 4, 2, 32, 16

    key = jax.random.PRNGKey(0)
    kx, ky, kp = jax.random.split(key, 3)
    x = jax.random.normal(kx, (B, P, input_dim_x), jnp.float32)
    y = jax.random.normal(ky, (B, P, input_dim_y), jnp.float32)
    params = init_params(kp, input_dim_x, input_dim_y, hidden_dim, r_dim)
    ref = np_encoder_ref(x, y, params)

    # Exact f32 path (one-time weight prep, then the fused kernel).
    prepped_f32 = prepare_params(params, input_dim_x, compute_dtype=jnp.float32)
    out_f32 = jax.block_until_ready(np_encoder_forward(x, y, prepped_f32))
    assert out_f32.shape == (B, P, r_dim)
    assert jnp.allclose(out_f32, ref, atol=1e-5, rtol=1e-5), "f32 mismatch vs reference"

    # bf16 compute path (halves weight/activation HBM traffic; f32 accumulation).
    prepped_bf16 = prepare_params(params, input_dim_x, compute_dtype=jnp.bfloat16)
    out_bf16 = jax.block_until_ready(np_encoder_forward(x, y, prepped_bf16))
    assert out_bf16.shape == (B, P, r_dim)
    assert jnp.allclose(out_bf16, ref, atol=5e-2, rtol=5e-2), "bf16 mismatch vs reference"

    print("KERNEL_OK")
</pallas_src>

<mosaic_0001>
module attributes {stable_mosaic.version = 11 : i64} {
  func.func @_mlp_kernel(%arg0: i32, %arg1: memref<8x4xf32, #tpu.memory_space<vmem>>, %arg2: memref<8x2xf32, #tpu.memory_space<vmem>>, %arg3: memref<4x32xf32, #tpu.memory_space<vmem>>, %arg4: memref<2x32xf32, #tpu.memory_space<vmem>>, %arg5: memref<1x32xf32, #tpu.memory_space<vmem>>, %arg6: memref<32x32xf32, #tpu.memory_space<vmem>>, %arg7: memref<1x32xf32, #tpu.memory_space<vmem>>, %arg8: memref<32x16xf32, #tpu.memory_space<vmem>>, %arg9: memref<1x16xf32, #tpu.memory_space<vmem>>, %arg10: memref<8x16xf32, #tpu.memory_space<vmem>>) attributes {dimension_semantics = [#tpu.dimension_semantics<parallel>], iteration_bounds = array<i64: 2>, scalar_prefetch = 0 : i64, scratch_operands = 0 : i64, tpu.core_type = #tpu.core_type<tc>, window_params = [{transform_indices = @transform_0, window_bounds = array<i64: 8, 4>}, {transform_indices = @transform_1, window_bounds = array<i64: 8, 2>}, {pipeline_mode = #tpu.pipeline_mode<synchronous>, transform_indices = @transform_2, window_bounds = array<i64: 4, 32>}, {pipeline_mode = #tpu.pipeline_mode<synchronous>, transform_indices = @transform_3, window_bounds = array<i64: 2, 32>}, {pipeline_mode = #tpu.pipeline_mode<synchronous>, transform_indices = @transform_4, window_bounds = array<i64: 1, 32>}, {pipeline_mode = #tpu.pipeline_mode<synchronous>, transform_indices = @transform_5, window_bounds = array<i64: 32, 32>}, {pipeline_mode = #tpu.pipeline_mode<synchronous>, transform_indices = @transform_6, window_bounds = array<i64: 1, 32>}, {pipeline_mode = #tpu.pipeline_mode<synchronous>, transform_indices = @transform_7, window_bounds = array<i64: 32, 16>}, {pipeline_mode = #tpu.pipeline_mode<synchronous>, transform_indices = @transform_8, window_bounds = array<i64: 1, 16>}, {transform_indices = @transform_9, window_bounds = array<i64: 8, 16>}]} {
    %c0 = arith.constant 0 : index
    %c0_0 = arith.constant 0 : index
    %0 = vector.load %arg1[%c0, %c0_0] : memref<8x4xf32, #tpu.memory_space<vmem>>, vector<8x4xf32>
    %c0_1 = arith.constant 0 : index
    %c0_2 = arith.constant 0 : index
    %1 = vector.load %arg3[%c0_1, %c0_2] : memref<4x32xf32, #tpu.memory_space<vmem>>, vector<4x32xf32>
    %cst = arith.constant dense<0.000000e+00> : vector<8x32xf32>
    %2 = tpu.matmul %0, %1, %cst {dimension_numbers = #tpu.dot_dimension_numbers<[1], [0], [0], [1], [0, 0, 1, 1], [], []>} : vector<8x4xf32>, vector<4x32xf32>, vector<8x32xf32> -> vector<8x32xf32>
    %c0_3 = arith.constant 0 : index
    %c0_4 = arith.constant 0 : index
    %3 = vector.load %arg2[%c0_3, %c0_4] : memref<8x2xf32, #tpu.memory_space<vmem>>, vector<8x2xf32>
    %c0_5 = arith.constant 0 : index
    %c0_6 = arith.constant 0 : index
    %4 = vector.load %arg4[%c0_5, %c0_6] : memref<2x32xf32, #tpu.memory_space<vmem>>, vector<2x32xf32>
    %cst_7 = arith.constant dense<0.000000e+00> : vector<8x32xf32>
    %5 = tpu.matmul %3, %4, %cst_7 {dimension_numbers = #tpu.dot_dimension_numbers<[1], [0], [0], [1], [0, 0, 1, 1], [], []>} : vector<8x2xf32>, vector<2x32xf32>, vector<8x32xf32> -> vector<8x32xf32>
    %6 = arith.addf %2, %5 : vector<8x32xf32>
    %c0_8 = arith.constant 0 : index
    %c0_9 = arith.constant 0 : index
    %7 = vector.load %arg5[%c0_8, %c0_9] : memref<1x32xf32, #tpu.memory_space<vmem>>, vector<1x32xf32>
    %8 = vector.broadcast %7 : vector<1x32xf32> to vector<8x32xf32>
    %9 = arith.addf %6, %8 : vector<8x32xf32>
    %cst_10 = arith.constant 0.000000e+00 : f32
    %10 = vector.broadcast %cst_10 : f32 to vector<8x32xf32>
    %11 = arith.maximumf %9, %10 : vector<8x32xf32>
    %c0_11 = arith.constant 0 : index
    %c0_12 = arith.constant 0 : index
    %12 = vector.load %arg6[%c0_11, %c0_12] : memref<32x32xf32, #tpu.memory_space<vmem>>, vector<32x32xf32>
    %cst_13 = arith.constant dense<0.000000e+00> : vector<8x32xf32>
    %13 = tpu.matmul %11, %12, %cst_13 {dimension_numbers = #tpu.dot_dimension_numbers<[1], [0], [0], [1], [0, 0, 1, 1], [], []>} : vector<8x32xf32>, vector<32x32xf32>, vector<8x32xf32> -> vector<8x32xf32>
    %c0_14 = arith.constant 0 : index
    %c0_15 = arith.constant 0 : index
    %14 = vector.load %arg7[%c0_14, %c0_15] : memref<1x32xf32, #tpu.memory_space<vmem>>, vector<1x32xf32>
    %15 = vector.broadcast %14 : vector<1x32xf32> to vector<8x32xf32>
    %16 = arith.addf %13, %15 : vector<8x32xf32>
    %cst_16 = arith.constant 0.000000e+00 : f32
    %17 = vector.broadcast %cst_16 : f32 to vector<8x32xf32>
    %18 = arith.maximumf %16, %17 : vector<8x32xf32>
    %c0_17 = arith.constant 0 : index
    %c0_18 = arith.constant 0 : index
    %19 = vector.load %arg8[%c0_17, %c0_18] : memref<32x16xf32, #tpu.memory_space<vmem>>, vector<32x16xf32>
    %cst_19 = arith.constant dense<0.000000e+00> : vector<8x16xf32>
    %20 = tpu.matmul %18, %19, %cst_19 {dimension_numbers = #tpu.dot_dimension_numbers<[1], [0], [0], [1], [0, 0, 1, 1], [], []>} : vector<8x32xf32>, vector<32x16xf32>, vector<8x16xf32> -> vector<8x16xf32>
    %c0_20 = arith.constant 0 : index
    %c0_21 = arith.constant 0 : index
    %21 = vector.load %arg9[%c0_20, %c0_21] : memref<1x16xf32, #tpu.memory_space<vmem>>, vector<1x16xf32>
    %22 = vector.broadcast %21 : vector<1x16xf32> to vector<8x16xf32>
    %23 = arith.addf %20, %22 : vector<8x16xf32>
    %c0_22 = arith.constant 0 : index
    %c0_23 = arith.constant 0 : index
    %24 = vector.load %arg10[%c0_22, %c0_23] : memref<8x16xf32, #tpu.memory_space<vmem>>, vector<8x16xf32>
    tpu.vector_store %arg10[%c0_22, %c0_23], %23 {strides = array<i32>} : memref<8x16xf32, #tpu.memory_space<vmem>>, vector<8x16xf32>,
    return
  }
  func.func @transform_0(%arg0: i32) -> (i32, i32) {
    %c0_i32 = arith.constant 0 : i32
    %c0_i32_0 = arith.constant 0 : i32
    return %arg0, %c0_i32 : i32, i32
  }
  func.func @transform_1(%arg0: i32) -> (i32, i32) {
    %c0_i32 = arith.constant 0 : i32
    %c0_i32_0 = arith.constant 0 : i32
    return %arg0, %c0_i32 : i32, i32
  }
  func.func @transform_2(%arg0: i32) -> (i32, i32) {
    %c0_i32 = arith.constant 0 : i32
    %c0_i32_0 = arith.constant 0 : i32
    %c0_i32_1 = arith.constant 0 : i32
    return %c0_i32, %c0_i32_0 : i32, i32
  }
  func.func @transform_3(%arg0: i32) -> (i32, i32) {
    %c0_i32 = arith.constant 0 : i32
    %c0_i32_0 = arith.constant 0 : i32
    %c0_i32_1 = arith.constant 0 : i32
    return %c0_i32, %c0_i32_0 : i32, i32
  }
  func.func @transform_4(%arg0: i32) -> (i32, i32) {
    %c0_i32 = arith.constant 0 : i32
    %c0_i32_0 = arith.constant 0 : i32
    %c0_i32_1 = arith.constant 0 : i32
    return %c0_i32, %c0_i32_0 : i32, i32
  }
  func.func @transform_5(%arg0: i32) -> (i32, i32) {
    %c0_i32 = arith.constant 0 : i32
    %c0_i32_0 = arith.constant 0 : i32
    %c0_i32_1 = arith.constant 0 : i32
    return %c0_i32, %c0_i32_0 : i32, i32
  }
  func.func @transform_6(%arg0: i32) -> (i32, i32) {
    %c0_i32 = arith.constant 0 : i32
    %c0_i32_0 = arith.constant 0 : i32
    %c0_i32_1 = arith.constant 0 : i32
    return %c0_i32, %c0_i32_0 : i32, i32
  }
  func.func @transform_7(%arg0: i32) -> (i32, i32) {
    %c0_i32 = arith.constant 0 : i32
    %c0_i32_0 = arith.constant 0 : i32
    %c0_i32_1 = arith.constant 0 : i32
    return %c0_i32, %c0_i32_0 : i32, i32
  }
  func.func @transform_8(%arg0: i32) -> (i32, i32) {
    %c0_i32 = arith.constant 0 : i32
    %c0_i32_0 = arith.constant 0 : i32
    %c0_i32_1 = arith.constant 0 : i32
    return %c0_i32, %c0_i32_0 : i32, i32
  }
  func.func @transform_9(%arg0: i32) -> (i32, i32) {
    %c0_i32 = arith.constant 0 : i32
    %c0_i32_0 = arith.constant 0 : i32
    return %arg0, %c0_i32 : i32, i32
  }
}

module attributes {stable_mosaic.version = 11 : i64} {
  func.func @_mlp_kernel(%arg0: i32, %arg1: memref<8x4xf32, #tpu.memory_space<vmem>>, %arg2: memref<8x2xf32, #tpu.memory_space<vmem>>, %arg3: memref<4x32xf32, #tpu.memory_space<vmem>>, %arg4: memref<2x32xf32, #tpu.memory_space<vmem>>, %arg5: memref<1x32xf32, #tpu.memory_space<vmem>>, %arg6: memref<32x32xf32, #tpu.memory_space<vmem>>, %arg7: memref<1x32xf32, #tpu.memory_space<vmem>>, %arg8: memref<32x16xf32, #tpu.memory_space<vmem>>, %arg9: memref<1x16xf32, #tpu.memory_space<vmem>>, %arg10: memref<8x16xf32, #tpu.memory_space<vmem>>) attributes {dimension_semantics = [#tpu.dimension_semantics<parallel>], iteration_bounds = array<i64: 2>, scalar_prefetch = 0 : i64, scratch_operands = 0 : i64, tpu.core_type = #tpu.core_type<tc>, window_params = [{transform_indices = @transform_0, window_bounds = array<i64: 8, 4>}, {transform_indices = @transform_1, window_bounds = array<i64: 8, 2>}, {pipeline_mode = #tpu.pipeline_mode<synchronous>, transform_indices = @transform_2, window_bounds = array<i64: 4, 32>}, {pipeline_mode = #tpu.pipeline_mode<synchronous>, transform_indices = @transform_3, window_bounds = array<i64: 2, 32>}, {pipeline_mode = #tpu.pipeline_mode<synchronous>, transform_indices = @transform_4, window_bounds = array<i64: 1, 32>}, {pipeline_mode = #tpu.pipeline_mode<synchronous>, transform_indices = @transform_5, window_bounds = array<i64: 32, 32>}, {pipeline_mode = #tpu.pipeline_mode<synchronous>, transform_indices = @transform_6, window_bounds = array<i64: 1, 32>}, {pipeline_mode = #tpu.pipeline_mode<synchronous>, transform_indices = @transform_7, window_bounds = array<i64: 32, 16>}, {pipeline_mode = #tpu.pipeline_mode<synchronous>, transform_indices = @transform_8, window_bounds = array<i64: 1, 16>}, {transform_indices = @transform_9, window_bounds = array<i64: 8, 16>}]} {
    %c0 = arith.constant 0 : index
    %c0_0 = arith.constant 0 : index
    %0 = vector.load %arg1[%c0, %c0_0] : memref<8x4xf32, #tpu.memory_space<vmem>>, vector<8x4xf32>
    %c0_1 = arith.constant 0 : index
    %c0_2 = arith.constant 0 : index
    %1 = vector.load %arg3[%c0_1, %c0_2] : memref<4x32xf32, #tpu.memory_space<vmem>>, vector<4x32xf32>
    %cst = arith.constant dense<0.000000e+00> : vector<8x32xf32>
    %2 = tpu.matmul %0, %1, %cst {dimension_numbers = #tpu.dot_dimension_numbers<[1], [0], [0], [1], [0, 0, 1, 1], [], []>} : vector<8x4xf32>, vector<4x32xf32>, vector<8x32xf32> -> vector<8x32xf32>
    %c0_3 = arith.constant 0 : index
    %c0_4 = arith.constant 0 : index
    %3 = vector.load %arg2[%c0_3, %c0_4] : memref<8x2xf32, #tpu.memory_space<vmem>>, vector<8x2xf32>
    %c0_5 = arith.constant 0 : index
    %c0_6 = arith.constant 0 : index
    %4 = vector.load %arg4[%c0_5, %c0_6] : memref<2x32xf32, #tpu.memory_space<vmem>>, vector<2x32xf32>
    %cst_7 = arith.constant dense<0.000000e+00> : vector<8x32xf32>
    %5 = tpu.matmul %3, %4, %cst_7 {dimension_numbers = #tpu.dot_dimension_numbers<[1], [0], [0], [1], [0, 0, 1, 1], [], []>} : vector<8x2xf32>, vector<2x32xf32>, vector<8x32xf32> -> vector<8x32xf32>
    %6 = arith.addf %2, %5 : vector<8x32xf32>
    %c0_8 = arith.constant 0 : index
    %c0_9 = arith.constant 0 : index
    %7 = vector.load %arg5[%c0_8, %c0_9] : memref<1x32xf32, #tpu.memory_space<vmem>>, vector<1x32xf32>
    %8 = vector.broadcast %7 : vector<1x32xf32> to vector<8x32xf32>
    %9 = arith.addf %6, %8 : vector<8x32xf32>
    %cst_10 = arith.constant 0.000000e+00 : f32
    %10 = vector.broadcast %cst_10 : f32 to vector<8x32xf32>
    %11 = arith.maximumf %9, %10 : vector<8x32xf32>
    %c0_11 = arith.constant 0 : index
    %c0_12 = arith.constant 0 : index
    %12 = vector.load %arg6[%c0_11, %c0_12] : memref<32x32xf32, #tpu.memory_space<vmem>>, vector<32x32xf32>
    %cst_13 = arith.constant dense<0.000000e+00> : vector<8x32xf32>
    %13 = tpu.matmul %11, %12, %cst_13 {dimension_numbers = #tpu.dot_dimension_numbers<[1], [0], [0], [1], [0, 0, 1, 1], [], []>} : vector<8x32xf32>, vector<32x32xf32>, vector<8x32xf32> -> vector<8x32xf32>
    %c0_14 = arith.constant 0 : index
    %c0_15 = arith.constant 0 : index
    %14 = vector.load %arg7[%c0_14, %c0_15] : memref<1x32xf32, #tpu.memory_space<vmem>>, vector<1x32xf32>
    %15 = vector.broadcast %14 : vector<1x32xf32> to vector<8x32xf32>
    %16 = arith.addf %13, %15 : vector<8x32xf32>
    %cst_16 = arith.constant 0.000000e+00 : f32
    %17 = vector.broadcast %cst_16 : f32 to vector<8x32xf32>
    %18 = arith.maximumf %16, %17 : vector<8x32xf32>
    %c0_17 = arith.constant 0 : index
    %c0_18 = arith.constant 0 : index
    %19 = vector.load %arg8[%c0_17, %c0_18] : memref<32x16xf32, #tpu.memory_space<vmem>>, vector<32x16xf32>
    %cst_19 = arith.constant dense<0.000000e+00> : vector<8x16xf32>
    %20 = tpu.matmul %18, %19, %cst_19 {dimension_numbers = #tpu.dot_dimension_numbers<[1], [0], [0], [1], [0, 0, 1, 1], [], []>} : vector<8x32xf32>, vector<32x16xf32>, vector<8x16xf32> -> vector<8x16xf32>
    %c0_20 = arith.constant 0 : index
    %c0_21 = arith.constant 0 : index
    %21 = vector.load %arg9[%c0_20, %c0_21] : memref<1x16xf32, #tpu.memory_space<vmem>>, vector<1x16xf32>
    %22 = vector.broadcast %21 : vector<1x16xf32> to vector<8x16xf32>
    %23 = arith.addf %20, %22 : vector<8x16xf32>
    %c0_22 = arith.constant 0 : index
    %c0_23 = arith.constant 0 : index
    %24 = vector.load %arg10[%c0_22, %c0_23] : memref<8x16xf32, #tpu.memory_space<vmem>>, vector<8x16xf32>
    tpu.vector_store %arg10[%c0_22, %c0_23], %23 {strides = array<i32>} : memref<8x16xf32, #tpu.memory_space<vmem>>, vector<8x16xf32>,
    return
  }
  func.func @transform_0(%arg0: i32) -> (i32, i32) {
    %c0_i32 = arith.constant 0 : i32
    %c0_i32_0 = arith.constant 0 : i32
    return %arg0, %c0_i32 : i32, i32
  }
  func.func @transform_1(%arg0: i32) -> (i32, i32) {
    %c0_i32 = arith.constant 0 : i32
    %c0_i32_0 = arith.constant 0 : i32
    return %arg0, %c0_i32 : i32, i32
  }
  func.func @transform_2(%arg0: i32) -> (i32, i32) {
    %c0_i32 = arith.constant 0 : i32
    %c0_i32_0 = arith.constant 0 : i32
    %c0_i32_1 = arith.constant 0 : i32
    return %c0_i32, %c0_i32_0 : i32, i32
  }
  func.func @transform_3(%arg0: i32) -> (i32, i32) {
    %c0_i32 = arith.constant 0 : i32
    %c0_i32_0 = arith.constant 0 : i32
    %c0_i32_1 = arith.constant 0 : i32
    return %c0_i32, %c0_i32_0 : i32, i32
  }
  func.func @transform_4(%arg0: i32) -> (i32, i32) {
    %c0_i32 = arith.constant 0 : i32
    %c0_i32_0 = arith.constant 0 : i32
    %c0_i32_1 = arith.constant 0 : i32
    return %c0_i32, %c0_i32_0 : i32, i32
  }
  func.func @transform_5(%arg0: i32) -> (i32, i32) {
    %c0_i32 = arith.constant 0 : i32
    %c0_i32_0 = arith.constant 0 : i32
    %c0_i32_1 = arith.constant 0 : i32
    return %c0_i32, %c0_i32_0 : i32, i32
  }
  func.func @transform_6(%arg0: i32) -> (i32, i32) {
    %c0_i32 = arith.constant 0 : i32
    %c0_i32_0 = arith.constant 0 : i32
    %c0_i32_1 = arith.constant 0 : i32
    return %c0_i32, %c0_i32_0 : i32, i32
  }
  func.func @transform_7(%arg0: i32) -> (i32, i32) {
    %c0_i32 = arith.constant 0 : i32
    %c0_i32_0 = arith.constant 0 : i32
    %c0_i32_1 = arith.constant 0 : i32
    return %c0_i32, %c0_i32_0 : i32, i32
  }
  func.func @transform_8(%arg0: i32) -> (i32, i32) {
    %c0_i32 = arith.constant 0 : i32
    %c0_i32_0 = arith.constant 0 : i32
    %c0_i32_1 = arith.constant 0 : i32
    return %c0_i32, %c0_i32_0 : i32, i32
  }
  func.func @transform_9(%arg0: i32) -> (i32, i32) {
    %c0_i32 = arith.constant 0 : i32
    %c0_i32_0 = arith.constant 0 : i32
    return %arg0, %c0_i32 : i32, i32
  }
}

</mosaic_0001>

<llo_original>
// kernel: tpu_custom_call.1
$region0: #{tpu_custom_call.1}
  #allocation0 [shape = 'u32[]', space=smem, size = 0x4, offset = 0x4, fixed_abs, tag = 'smem constant byte address 0x4 - core index']
  #allocation1 [shape = 'u32[144,128]{1,0:T(1,128)}', space=vmem, size = 0x12000, scoped, tag = 'internal scratch']
  %s0 = inlined_call_operand.vmem [shape: f32[16,4], index: 0, kind: input, shape index: {}]
  %s1 = inlined_call_operand.vmem [shape: f32[16,2], index: 1, kind: input, shape index: {}]
  %s2 = inlined_call_operand.vmem [shape: f32[4,32], index: 2, kind: input, shape index: {}]
  %s3 = inlined_call_operand.vmem [shape: f32[2,32], index: 3, kind: input, shape index: {}]
  %s4 = inlined_call_operand.vmem [shape: f32[1,32], index: 4, kind: input, shape index: {}]
  %s5 = inlined_call_operand.vmem [shape: f32[32,32], index: 5, kind: input, shape index: {}]
  %s6 = inlined_call_operand.vmem [shape: f32[1,32], index: 6, kind: input, shape index: {}]
  %s7 = inlined_call_operand.vmem [shape: f32[32,16], index: 7, kind: input, shape index: {}]
  %s8 = inlined_call_operand.vmem [shape: f32[1,16], index: 8, kind: input, shape index: {}]
  %s9 = inlined_call_operand.hbm [shape: f32[16,16], index: 9, kind: output, shape index: {}]
  %s10 = sld [smem:[#allocation0]]
  $region69: #{tpu_custom_call.1} parent=0
    _
  %s12 = ssub.s32 1, %s10
  %s13 = scalar_select 0, %s12, %s10
  $region1: #{tpu_custom_call.1} parent=0
    #allocation2 [shape = 'u8[8192]{0}', space=vmem, size = 0x2000, scoped, tag = 'output window, operand 0']
    #allocation3 [shape = 's32[2]{0}', space=sflag, size = 0x8, scoped, tag = 'scoped memory for tpu_custom_call.1']
    %14 = vsyncpa [#allocation3], 0
    %s15 = scalar_lea.sflag [#allocation3], 1
    %16 = vsyncpa %s15, 0
    loop: start=0, step=1, limit=4
    $region2: #{tpu_custom_call.1} parent=1 // loop_pre_header
      _
    $region3: #{tpu_custom_call.1} parent=1 // loop_header
      %s18 = sphi 0, %s22
      %p19 = scmp.ge.s32.totalorder %s18, 4
      %s28 = sphi 0, %s30
      %s31 = sphi 0, %s28
      %s32 = sphi 0, %s31
      %s48 = sphi 0, %s32
      %s54 = sphi 0, %s56
      %s57 = sphi 0, %s54
      %s58 = sphi 0, %s57
      %s74 = sphi 0, %s58
      %s78 = sphi 0, %s78
      %s80 = sphi 0, %s78
      %s81 = sphi 0, %s80
      %s95 = sphi 0, %s81
      %s99 = sphi 0, %s99
      %s101 = sphi 0, %s99
      %s102 = sphi 0, %s101
      %s116 = sphi 0, %s102
      %s120 = sphi 0, %s120
      %s122 = sphi 0, %s120
      %s123 = sphi 0, %s122
      %s137 = sphi 0, %s123
      %s141 = sphi 0, %s141
      %s143 = sphi 0, %s141
      %s144 = sphi 0, %s143
      %s158 = sphi 0, %s144
      %s162 = sphi 0, %s162
      %s164 = sphi 0, %s162
      %s165 = sphi 0, %s164
      %s179 = sphi 0, %s165
      %s183 = sphi 0, %s183
      %s185 = sphi 0, %s183
      %s186 = sphi 0, %s185
      %s200 = sphi 0, %s186
      %s204 = sphi 0, %s204
      %s206 = sphi 0, %s204
      %s207 = sphi 0, %s206
      %s221 = sphi 0, %s207
      %s227 = sphi 0, %s229
      %s230 = sphi 0, %s227
      %s231 = sphi 0, %s230
      %s247 = sphi 0, %s231
    $region4: #{tpu_custom_call.1} parent=1 // loop_header_branch
      %21 = sbr.rel (%p19) target = $region8
    $region5: #{tpu_custom_call.1} parent=1 // loop_body
      %s23 = ssub.s32 %s18, 1
      %s24 = ssub.s32 %s18, 2
      %s25 = sadd.s32 %s18, 1
      %s26 = ssub.s32 %s18, %s25
      %p27 = scmp.eq.s32.totalorder %s26, 0
      %s29 = sadd.s32 %s28, 1
      %s30 = scalar_select %p27, %s28, %s29
      %p33 = pneg %p27
      %p34 = scmp.eq.s32.totalorder %s18, 1
      %p35 = por %p33, %p34
      %p36 = scmp.ne.s32.totalorder %s28, %s31
      %p37 = scmp.eq.s32.totalorder %s18, 0
      %p38 = por %p36, %p37
      %p39 = scmp.ne.s32.totalorder %s28, %s31
      %p40 = scmp.eq.s32.totalorder %s23, 1
      %p41 = por %p39, %p40
      %p42 = scmp.ne.s32.totalorder %s31, %s32
      %p43 = scmp.eq.s32.totalorder %s23, 0
      %p44 = por %p42, %p43
      %p45 = scmp.ne.s32.totalorder %s31, %s32
      %p46 = scmp.eq.s32.totalorder %s24, 1
      %p47 = por %p45, %p46
      %p49 = scmp.ne.s32.totalorder %s32, %s48
      %p50 = scmp.eq.s32.totalorder %s24, 0
      %p51 = por %p49, %p50
      %s52 = ssub.s32 %s18, %s25
      %p53 = scmp.eq.s32.totalorder %s52, 0
      %s55 = sadd.s32 %s54, 1
      %s56 = scalar_select %p53, %s54, %s55
      %p59 = pneg %p53
      %p60 = scmp.eq.s32.totalorder %s18, 1
      %p61 = por %p59, %p60
      %p62 = scmp.ne.s32.totalorder %s54, %s57
      %p63 = scmp.eq.s32.totalorder %s18, 0
      %p64 = por %p62, %p63
      %p65 = scmp.ne.s32.totalorder %s54, %s57
      %p66 = scmp.eq.s32.totalorder %s23, 1
      %p67 = por %p65, %p66
      %p68 = scmp.ne.s32.totalorder %s57, %s58
      %p69 = scmp.eq.s32.totalorder %s23, 0
      %p70 = por %p68, %p69
      %p71 = scmp.ne.s32.totalorder %s57, %s58
      %p72 = scmp.eq.s32.totalorder %s24, 1
      %p73 = por %p71, %p72
      %p75 = scmp.ne.s32.totalorder %s58, %s74
      %p76 = scmp.eq.s32.totalorder %s24, 0
      %p77 = por %p75, %p76
      %s79 = sadd.s32 %s78, 1
      %p82 = scmp.eq.s32.totalorder %s18, 1
      %p83 = scmp.ne.s32.totalorder %s78, %s80
      %p84 = scmp.eq.s32.totalorder %s18, 0
      %p85 = por %p83, %p84
      %p86 = scmp.ne.s32.totalorder %s78, %s80
      %p87 = scmp.eq.s32.totalorder %s23, 1
      %p88 = por %p86, %p87
      %p89 = scmp.ne.s32.totalorder %s80, %s81
      %p90 = scmp.eq.s32.totalorder %s23, 0
      %p91 = por %p89, %p90
      %p92 = scmp.ne.s32.totalorder %s80, %s81
      %p93 = scmp.eq.s32.totalorder %s24, 1
      %p94 = por %p92, %p93
      %p96 = scmp.ne.s32.totalorder %s81, %s95
      %p97 = scmp.eq.s32.totalorder %s24, 0
      %p98 = por %p96, %p97
      %s100 = sadd.s32 %s99, 1
      %p103 = scmp.eq.s32.totalorder %s18, 1
      %p104 = scmp.ne.s32.totalorder %s99, %s101
      %p105 = scmp.eq.s32.totalorder %s18, 0
      %p106 = por %p104, %p105
      %p107 = scmp.ne.s32.totalorder %s99, %s101
      %p108 = scmp.eq.s32.totalorder %s23, 1
      %p109 = por %p107, %p108
      %p110 = scmp.ne.s32.totalorder %s101, %s102
      %p111 = scmp.eq.s32.totalorder %s23, 0
      %p112 = por %p110, %p111
      %p113 = scmp.ne.s32.totalorder %s101, %s102
      %p114 = scmp.eq.s32.totalorder %s24, 1
      %p115 = por %p113, %p114
      %p117 = scmp.ne.s32.totalorder %s102, %s116
      %p118 = scmp.eq.s32.totalorder %s24, 0
      %p119 = por %p117, %p118
      %s121 = sadd.s32 %s120, 1
      %p124 = scmp.eq.s32.totalorder %s18, 1
      %p125 = scmp.ne.s32.totalorder %s120, %s122
      %p126 = scmp.eq.s32.totalorder %s18, 0
      %p127 = por %p125, %p126
      %p128 = scmp.ne.s32.totalorder %s120, %s122
      %p129 = scmp.eq.s32.totalorder %s23, 1
      %p130 = por %p128, %p129
      %p131 = scmp.ne.s32.totalorder %s122, %s123
      %p132 = scmp.eq.s32.totalorder %s23, 0
      %p133 = por %p131, %p132
      %p134 = scmp.ne.s32.totalorder %s122, %s123
      %p135 = scmp.eq.s32.totalorder %s24, 1
      %p136 = por %p134, %p135
      %p138 = scmp.ne.s32.totalorder %s123, %s137
      %p139 = scmp.eq.s32.totalorder %s24, 0
      %p140 = por %p138, %p139
      %s142 = sadd.s32 %s141, 1
      %p145 = scmp.eq.s32.totalorder %s18, 1
      %p146 = scmp.ne.s32.totalorder %s141, %s143
      %p147 = scmp.eq.s32.totalorder %s18, 0
      %p148 = por %p146, %p147
      %p149 = scmp.ne.s32.totalorder %s141, %s143
      %p150 = scmp.eq.s32.totalorder %s23, 1
      %p151 = por %p149, %p150
      %p152 = scmp.ne.s32.totalorder %s143, %s144
      %p153 = scmp.eq.s32.totalorder %s23, 0
      %p154 = por %p152, %p153
      %p155 = scmp.ne.s32.totalorder %s143, %s144
      %p156 = scmp.eq.s32.totalorder %s24, 1
      %p157 = por %p155, %p156
      %p159 = scmp.ne.s32.totalorder %s144, %s158
      %p160 = scmp.eq.s32.totalorder %s24, 0
      %p161 = por %p159, %p160
      %s163 = sadd.s32 %s162, 1
      %p166 = scmp.eq.s32.totalorder %s18, 1
      %p167 = scmp.ne.s32.totalorder %s162, %s164
      %p168 = scmp.eq.s32.totalorder %s18, 0
      %p169 = por %p167, %p168
      %p170 = scmp.ne.s32.totalorder %s162, %s164
      %p171 = scmp.eq.s32.totalorder %s23, 1
      %p172 = por %p170, %p171
      %p173 = scmp.ne.s32.totalorder %s164, %s165
      %p174 = scmp.eq.s32.totalorder %s23, 0
      %p175 = por %p173, %p174
      %p176 = scmp.ne.s32.totalorder %s164, %s165
      %p177 = scmp.eq.s32.totalorder %s24, 1
      %p178 = por %p176, %p177
      %p180 = scmp.ne.s32.totalorder %s165, %s179
      %p181 = scmp.eq.s32.totalorder %s24, 0
      %p182 = por %p180, %p181
      %s184 = sadd.s32 %s183, 1
      %p187 = scmp.eq.s32.totalorder %s18, 1
      %p188 = scmp.ne.s32.totalorder %s183, %s185
      %p189 = scmp.eq.s32.totalorder %s18, 0
      %p190 = por %p188, %p189
      %p191 = scmp.ne.s32.totalorder %s183, %s185
      %p192 = scmp.eq.s32.totalorder %s23, 1
      %p193 = por %p191, %p192
      %p194 = scmp.ne.s32.totalorder %s185, %s186
      %p195 = scmp.eq.s32.totalorder %s23, 0
      %p196 = por %p194, %p195
      %p197 = scmp.ne.s32.totalorder %s185, %s186
      %p198 = scmp.eq.s32.totalorder %s24, 1
      %p199 = por %p197, %p198
      %p201 = scmp.ne.s32.totalorder %s186, %s200
      %p202 = scmp.eq.s32.totalorder %s24, 0
      %p203 = por %p201, %p202
      %s205 = sadd.s32 %s204, 1
      %p208 = scmp.eq.s32.totalorder %s18, 1
      %p209 = scmp.ne.s32.totalorder %s204, %s206
      %p210 = scmp.eq.s32.totalorder %s18, 0
      %p211 = por %p209, %p210
      %p212 = scmp.ne.s32.totalorder %s204, %s206
      %p213 = scmp.eq.s32.totalorder %s23, 1
      %p214 = por %p212, %p213
      %p215 = scmp.ne.s32.totalorder %s206, %s207
      %p216 = scmp.eq.s32.totalorder %s23, 0
      %p217 = por %p215, %p216
      %p218 = scmp.ne.s32.totalorder %s206, %s207
      %p219 = scmp.eq.s32.totalorder %s24, 1
      %p220 = por %p218, %p219
      %p222 = scmp.ne.s32.totalorder %s207, %s221
      %p223 = scmp.eq.s32.totalorder %s24, 0
      %p224 = por %p222, %p223
      %s225 = ssub.s32 %s18, %s25
      %p226 = scmp.eq.s32.totalorder %s225, 0
      %s228 = sadd.s32 %s227, 1
      %s229 = scalar_select %p226, %s227, %s228
      %p232 = pneg %p226
      %p233 = scmp.eq.s32.totalorder %s18, 1
      %p234 = por %p232, %p233
      %p235 = scmp.ne.s32.totalorder %s227, %s230
      %p236 = scmp.eq.s32.totalorder %s18, 0
      %p237 = por %p235, %p236
      %p238 = scmp.ne.s32.totalorder %s227, %s230
      %p239 = scmp.eq.s32.totalorder %s23, 1
      %p240 = por %p238, %p239
      %p241 = scmp.ne.s32.totalorder %s230, %s231
      %p242 = scmp.eq.s32.totalorder %s23, 0
      %p243 = por %p241, %p242
      %p244 = scmp.ne.s32.totalorder %s230, %s231
      %p245 = scmp.eq.s32.totalorder %s24, 1
      %p246 = por %p244, %p245
      %p248 = scmp.ne.s32.totalorder %s231, %s247
      %p249 = scmp.eq.s32.totalorder %s24, 0
      %p250 = por %p248, %p249
      %p251 = scmp.le.s32.totalorder 1, %s18
      %p252 = scmp.lt.s32.totalorder %s18, 3
      %p253 = pnand %p251, %p252
      %p254 = pneg %p253
      // Predicated region
      $region9: #{tpu_custom_call.1} parent=5 // pred_check
        _
      $region10: #{tpu_custom_call.1} parent=5 // pred_check_branch
        %256 = sbr.rel (%p253) target = $region12
      $region11: #{tpu_custom_call.1} parent=5 // pred_region
        %s257 = ssub.s32 %s18, 1
        // Predicated region
        $region13: #{tpu_custom_call.1} parent=11 // pred_check
          %p258 = pneg %p91
        $region14: #{tpu_custom_call.1} parent=11 // pred_check_branch
          %260 = sbr.rel (%p258) target = $region16
        $region15: #{tpu_custom_call.1} parent=11 // pred_region
          _
        $region16: #{tpu_custom_call.1} parent=11 // pred_fallthru
          _
        // Predicated region
        $region17: #{tpu_custom_call.1} parent=11 // pred_check
          %p261 = pneg %p112
        $region18: #{tpu_custom_call.1} parent=11 // pred_check_branch
          %263 = sbr.rel (%p261) target = $region20
        $region19: #{tpu_custom_call.1} parent=11 // pred_region
          _
        $region20: #{tpu_custom_call.1} parent=11 // pred_fallthru
          _
        // Predicated region
        $region21: #{tpu_custom_call.1} parent=11 // pred_check
          %p264 = pneg %p133
        $region22: #{tpu_custom_call.1} parent=11 // pred_check_branch
          %266 = sbr.rel (%p264) target = $region24
        $region23: #{tpu_custom_call.1} parent=11 // pred_region
          _
        $region24: #{tpu_custom_call.1} parent=11 // pred_fallthru
          _
        // Predicated region
        $region25: #{tpu_custom_call.1} parent=11 // pred_check
          %p267 = pneg %p154
        $region26: #{tpu_custom_call.1} parent=11 // pred_check_branch
          %269 = sbr.rel (%p267) target = $region28
        $region27: #{tpu_custom_call.1} parent=11 // pred_region
          _
        $region28: #{tpu_custom_call.1} parent=11 // pred_fallthru
          _
        // Predicated region
        $region29: #{tpu_custom_call.1} parent=11 // pred_check
          %p270 = pneg %p175
        $region30: #{tpu_custom_call.1} parent=11 // pred_check_branch
          %272 = sbr.rel (%p270) target = $region32
        $region31: #{tpu_custom_call.1} parent=11 // pred_region
          _
        $region32: #{tpu_custom_call.1} parent=11 // pred_fallthru
          _
        // Predicated region
        $region33: #{tpu_custom_call.1} parent=11 // pred_check
          %p273 = pneg %p196
        $region34: #{tpu_custom_call.1} parent=11 // pred_check_branch
          %275 = sbr.rel (%p273) target = $region36
        $region35: #{tpu_custom_call.1} parent=11 // pred_region
          _
        $region36: #{tpu_custom_call.1} parent=11 // pred_fallthru
          _
        // Predicated region
        $region37: #{tpu_custom_call.1} parent=11 // pred_check
          %p276 = pneg %p217
        $region38: #{tpu_custom_call.1} parent=11 // pred_check_branch
          %278 = sbr.rel (%p276) target = $region40
        $region39: #{tpu_custom_call.1} parent=11 // pred_region
          _
        $region40: #{tpu_custom_call.1} parent=11 // pred_fallthru
          _
      $region12: #{tpu_custom_call.1} parent=5 // pred_fallthru
        _
      %p279 = scmp.lt.s32.totalorder %s18, 2
      // Predicated region
      $region41: #{tpu_custom_call.1} parent=5 // pred_check
        %p280 = pneg %p279
      $region42: #{tpu_custom_call.1} parent=5 // pred_check_branch
        %282 = sbr.rel (%p280) target = $region44
      $region43: #{tpu_custom_call.1} parent=5 // pred_region
        // Predicated region
        $region45: #{tpu_custom_call.1} parent=43 // pred_check
          %p283 = pneg %p38
        $region46: #{tpu_custom_call.1} parent=43 // pred_check_branch
          %285 = sbr.rel (%p283) target = $region48
        $region47: #{tpu_custom_call.1} parent=43 // pred_region
          %p286 = scmp.lt.s32.totalorder %s18, 1
          %s287 = scalar_select %p286, %s18, 1
          %s288 = smul.addr %s287, 8
          %s289 = scalar_lea.vmem %s0, %s288
        $region48: #{tpu_custom_call.1} parent=43 // pred_fallthru
          _
        // Predicated region
        $region49: #{tpu_custom_call.1} parent=43 // pred_check
          %p290 = pneg %p64
        $region50: #{tpu_custom_call.1} parent=43 // pred_check_branch
          %292 = sbr.rel (%p290) target = $region52
        $region51: #{tpu_custom_call.1} parent=43 // pred_region
          %p293 = scmp.lt.s32.totalorder %s18, 1
          %s294 = scalar_select %p293, %s18, 1
          %s295 = smul.addr %s294, 8
          %s296 = scalar_lea.vmem %s1, %s295
        $region52: #{tpu_custom_call.1} parent=43 // pred_fallthru
          _
      $region44: #{tpu_custom_call.1} parent=5 // pred_fallthru
        _
      %p297 = scmp.le.s32.totalorder 1, %s18
      %p298 = scmp.lt.s32.totalorder %s18, 3
      %p299 = pnand %p297, %p298
      %p300 = pneg %p299
      // Predicated region
      $region53: #{tpu_custom_call.1} parent=5 // pred_check
        _
      $region54: #{tpu_custom_call.1} parent=5 // pred_check_branch
        %302 = sbr.rel (%p299) target = $region56
      $region55: #{tpu_custom_call.1} parent=5 // pred_region
        %s303 = ssub.s32 %s18, 1
        %p304 = scmp.lt.s32.totalorder %s23, 1
        %s305 = scalar_select %p304, %s23, 1
        %s306 = smul.addr %s305, 8
        %s307 = scalar_lea.vmem %s0, %s306
        %p308 = pneg %p44
        %p309 = pneg %p41
        %p310 = scmp.lt.s32.totalorder %s23, 1
        %s311 = scalar_select %p310, %s23, 1
        %s312 = smul.addr %s311, 8
        %s313 = scalar_lea.vmem %s1, %s312
        %p314 = pneg %p70
        %p315 = pneg %p67
        %p316 = pneg %p91
        %p317 = pneg %p88
        %p318 = pneg %p112
        %p319 = pneg %p109
        %p320 = pneg %p133
        %p321 = pneg %p130
        %p322 = pneg %p154
        %p323 = pneg %p151
        %p324 = pneg %p175
        %p325 = pneg %p172
        %p326 = pneg %p196
        %p327 = pneg %p193
        %p328 = pneg %p217
        %p329 = pneg %p214
        %p330 = pneg %p243
        %p331 = pneg %p240
        %s332 = sand.u32 %s230, 1
        %s333 = scalar_lea.sflag [#allocation3], %s332
        %s334 = sand.u32 %s230, 1
        %s335 = smul.addr %s334, 8
        %s336 = scalar_lea.vmem [#allocation2], %s335
        %p337 = scmp.lt.s32.totalorder %s23, 1
        %s338 = scalar_select %p337, %s23, 1
        %s339 = smul.addr %s338, 8
        %s340 = scalar_lea.vmem %s0, %s339
        %p341 = scmp.lt.s32.totalorder %s23, 1
        %s342 = scalar_select %p341, %s23, 1
        %s343 = smul.addr %s342, 8
        %s344 = scalar_lea.vmem %s1, %s343
        %v345 = vld [vmem:[%s340] sm:$0xff]
        %v346 = vld [vmem:[%s2] sm:$0xf]
        %v347 = vld [vmem:[%s344] sm:$0xff]
        %v348 = vld [vmem:[%s3] sm:$0x3]
        %vm349 = vcmask 15360
        %v351 = vsel %vm349, %v347, 0
        %vm353 = vcmask 1041408
        %v355 = vsel %vm353, %v348, 0
        %357 = vmatprep.subr.mxu0 0.0
        %358 = vmatpush1.msra.mxu0 0.0
        %359 = vmatprep.subr.mxu0 0.0
        %360 = vmatpush1.msra.mxu0 0.0
        %361 = vmatprep.subr.mxu0 0.0
        %362 = vmatpush1.msra.mxu0 0.0
        %363 = vmatprep.subr.mxu0 0.0
        %364 = vmatpush1.msra.mxu0 0.0
        %365 = vmatprep.subr.mxu0 0.0
        %366 = vmatpush1.msra.mxu0 0.0
        %367 = vmatprep.subr.mxu0 0.0
        %368 = vmatpush1.msra.mxu0 0.0
        %369 = vmatprep.subr.mxu0 0.0
        %370 = vmatpush1.msra.mxu0 0.0
        %371 = vmatprep.subr.mxu0 0.0
        %372 = vmatpush1.msra.mxu0 0.0
        %373 = vmatprep.subr.mxu0 0.0
        %374 = vmatpush1.msra.mxu0 0.0
        %375 = vmatprep.subr.mxu0 0.0
        %376 = vmatpush1.msra.mxu0 0.0
        %377 = vmatprep.subr.mxu0 0.0
        %378 = vmatpush1.msra.mxu0 0.0
        %379 = vmatprep.subr.mxu0 0.0
        %380 = vmatpush1.msra.mxu0 0.0
        %381 = vmatprep.subr.mxu0 0.0
        %382 = vmatpush1.msra.mxu0 0.0
        %383 = vmatprep.subr.mxu0 0.0
        %384 = vmatpush1.msra.mxu0 0.0
        %385 = vmatprep.subr.mxu0 0.0
        %386 = vmatpush1.msra.mxu0 0.0
        %387 = vmatprep.subr.mxu0 0.0
        %388 = vmatpush1.msra.mxu0 %v355
        %389 = vmatprep.subr.mxu0 0.0
        %390 = vmatpush2.msra.mxu0 0.0
        %391 = vmatprep.subr.mxu0 0.0
        %392 = vmatpush2.msra.mxu0 0.0
        %393 = vmatprep.subr.mxu0 0.0
        %394 = vmatpush2.msra.mxu0 0.0
        %395 = vmatprep.subr.mxu0 0.0
        %396 = vmatpush2.msra.mxu0 0.0
        %397 = vmatprep.subr.mxu0 0.0
        %398 = vmatpush2.msra.mxu0 0.0
        %399 = vmatprep.subr.mxu0 0.0
        %400 = vmatpush2.msra.mxu0 0.0
        %401 = vmatprep.subr.mxu0 0.0
        %402 = vmatpush2.msra.mxu0 0.0
        %403 = vmatprep.subr.mxu0 0.0
        %404 = vmatpush2.msra.mxu0 0.0
        %405 = vmatprep.subr.mxu0 0.0
        %406 = vmatpush2.msra.mxu0 0.0
        %407 = vmatprep.subr.mxu0 0.0
        %408 = vmatpush2.msra.mxu0 0.0
        %409 = vmatprep.subr.mxu0 0.0
        %410 = vmatpush2.msra.mxu0 0.0
        %411 = vmatprep.subr.mxu0 0.0
        %412 = vmatpush2.msra.mxu0 0.0
        %413 = vmatprep.subr.mxu0 0.0
        %414 = vmatpush2.msra.mxu0 0.0
        %415 = vmatprep.subr.mxu0 0.0
        %416 = vmatpush2.msra.mxu0 0.0
        %417 = vmatprep.subr.mxu0 0.0
        %418 = vmatpush2.msra.mxu0 0.0
        %419 = vmatprep.subr.mxu0 0.0
        %420 = vmatpush2.msra.mxu0 0.0
        %421 = vmatprep.mubr.f32.mxu0 0.0
        %422 = vmatmul.mubr.f32.gmra.mxu0 %v351
        %v423 = vpop.f32.mrf.mxu0
        %v424 = vadd.f32 0.0, %v423
        %v425 = vpop.f32.mrf.mxu0
        %426 = vdwg.mxu0
        %vm427 = vcmask 31744
        %v429 = vsel %vm427, %v345, 0
        %vm431 = vcmask 1043456
        %v433 = vsel %vm431, %v346, 0
        %435 = vmatprep.subr.mxu0 0.0
        %436 = vmatpush1.msra.mxu0 0.0
        %437 = vmatprep.subr.mxu0 0.0
        %438 = vmatpush1.msra.mxu0 0.0
        %439 = vmatprep.subr.mxu0 0.0
        %440 = vmatpush1.msra.mxu0 0.0
        %441 = vmatprep.subr.mxu0 0.0
        %442 = vmatpush1.msra.mxu0 0.0
        %443 = vmatprep.subr.mxu0 0.0
        %444 = vmatpush1.msra.mxu0 0.0
        %445 = vmatprep.subr.mxu0 0.0
        %446 = vmatpush1.msra.mxu0 0.0
        %447 = vmatprep.subr.mxu0 0.0
        %448 = vmatpush1.msra.mxu0 0.0
        %449 = vmatprep.subr.mxu0 0.0
        %450 = vmatpush1.msra.mxu0 0.0
        %451 = vmatprep.subr.mxu0 0.0
        %452 = vmatpush1.msra.mxu0 0.0
        %453 = vmatprep.subr.mxu0 0.0
        %454 = vmatpush1.msra.mxu0 0.0
        %455 = vmatprep.subr.mxu0 0.0
        %456 = vmatpush1.msra.mxu0 0.0
        %457 = vmatprep.subr.mxu0 0.0
        %458 = vmatpush1.msra.mxu0 0.0
        %459 = vmatprep.subr.mxu0 0.0
        %460 = vmatpush1.msra.mxu0 0.0
        %461 = vmatprep.subr.mxu0 0.0
        %462 = vmatpush1.msra.mxu0 0.0
        %463 = vmatprep.subr.mxu0 0.0
        %464 = vmatpush1.msra.mxu0 0.0
        %465 = vmatprep.subr.mxu0 0.0
        %466 = vmatpush1.msra.mxu0 %v433
        %467 = vmatprep.subr.mxu0 0.0
        %468 = vmatpush2.msra.mxu0 0.0
        %469 = vmatprep.subr.mxu0 0.0
        %470 = vmatpush2.msra.mxu0 0.0
        %471 = vmatprep.subr.mxu0 0.0
        %472 = vmatpush2.msra.mxu0 0.0
        %473 = vmatprep.subr.mxu0 0.0
        %474 = vmatpush2.msra.mxu0 0.0
        %475 = vmatprep.subr.mxu0 0.0
        %476 = vmatpush2.msra.mxu0 0.0
        %477 = vmatprep.subr.mxu0 0.0
        %478 = vmatpush2.msra.mxu0 0.0
        %479 = vmatprep.subr.mxu0 0.0
        %480 = vmatpush2.msra.mxu0 0.0
        %481 = vmatprep.subr.mxu0 0.0
        %482 = vmatpush2.msra.mxu0 0.0
        %483 = vmatprep.subr.mxu0 0.0
        %484 = vmatpush2.msra.mxu0 0.0
        %485 = vmatprep.subr.mxu0 0.0
        %486 = vmatpush2.msra.mxu0 0.0
        %487 = vmatprep.subr.mxu0 0.0
        %488 = vmatpush2.msra.mxu0 0.0
        %489 = vmatprep.subr.mxu0 0.0
        %490 = vmatpush2.msra.mxu0 0.0
        %491 = vmatprep.subr.mxu0 0.0
        %492 = vmatpush2.msra.mxu0 0.0
        %493 = vmatprep.subr.mxu0 0.0
        %494 = vmatpush2.msra.mxu0 0.0
        %495 = vmatprep.subr.mxu0 0.0
        %496 = vmatpush2.msra.mxu0 0.0
        %497 = vmatprep.subr.mxu0 0.0
        %498 = vmatpush2.msra.mxu0 0.0
        %499 = vmatprep.mubr.f32.mxu0 0.0
        %500 = vmatmul.mubr.f32.gmra.mxu0 %v429
        %v501 = vpop.f32.mrf.mxu0
        %v502 = vadd.f32 %v424, %v501
        %v503 = vpop.f32.mrf.mxu0
        %504 = vdwg.mxu0
        %v505 = vld [vmem:[%s4] sm:$0x1]
        %v507 = vlaneseq
        %v508 = vshrl.u32 %v507, 7
        %v509 = vsub.s32 0, %v508
        %v510 = vrot.slane %v505, %v509
        %v512 = vadd.f32 %v502, %v510
        %v513 = vmax.f32 %v512, 0.0
        %v514 = vld [vmem:[%s5] sm:$0xff]
        %v515 = vld [vmem:[%s5 + $0x8] sm:$0xff]
        %v516 = vld [vmem:[%s5 + $0x10] sm:$0xff]
        %v517 = vld [vmem:[%s5 + $0x18] sm:$0xff]
        %v518 = vld [vmem:[%s6] sm:$0x1]
        %v520 = vlaneseq
        %v521 = vshrl.u32 %v520, 7
        %v522 = vsub.s32 0, %v521
        %v523 = vrot.slane %v518, %v522
        %vm525 = vcmask 261120
        %v527 = vsel %vm525, %v513, 0
        %529 = vmatprep.subr.mxu0 0.0
        %530 = vmatpush1.msra.mxu0 0.0
        %531 = vmatprep.subr.mxu0 0.0
        %532 = vmatpush1.msra.mxu0 0.0
        %533 = vmatprep.subr.mxu0 0.0
        %534 = vmatpush1.msra.mxu0 0.0
        %535 = vmatprep.subr.mxu0 0.0
        %536 = vmatpush1.msra.mxu0 0.0
        %537 = vmatprep.subr.mxu0 0.0
        %538 = vmatpush1.msra.mxu0 0.0
        %539 = vmatprep.subr.mxu0 0.0
        %540 = vmatpush1.msra.mxu0 0.0
        %541 = vmatprep.subr.mxu0 0.0
        %542 = vmatpush1.msra.mxu0 0.0
        %543 = vmatprep.subr.mxu0 0.0
        %544 = vmatpush1.msra.mxu0 0.0
        %545 = vmatprep.subr.mxu0 0.0
        %546 = vmatpush1.msra.mxu0 0.0
        %547 = vmatprep.subr.mxu0 0.0
        %548 = vmatpush1.msra.mxu0 0.0
        %549 = vmatprep.subr.mxu0 0.0
        %550 = vmatpush1.msra.mxu0 0.0
        %551 = vmatprep.subr.mxu0 0.0
        %552 = vmatpush1.msra.mxu0 0.0
        %553 = vmatprep.subr.mxu0 0.0
        %554 = vmatpush1.msra.mxu0 %v517
        %555 = vmatprep.subr.mxu0 0.0
        %556 = vmatpush1.msra.mxu0 %v516
        %557 = vmatprep.subr.mxu0 0.0
        %558 = vmatpush1.msra.mxu0 %v515
        %559 = vmatprep.subr.mxu0 0.0
        %560 = vmatpush1.msra.mxu0 %v514
        %561 = vmatprep.subr.mxu0 0.0
        %562 = vmatpush2.msra.mxu0 0.0
        %563 = vmatprep.subr.mxu0 0.0
        %564 = vmatpush2.msra.mxu0 0.0
        %565 = vmatprep.subr.mxu0 0.0
        %566 = vmatpush2.msra.mxu0 0.0
        %567 = vmatprep.subr.mxu0 0.0
        %568 = vmatpush2.msra.mxu0 0.0
        %569 = vmatprep.subr.mxu0 0.0
        %570 = vmatpush2.msra.mxu0 0.0
        %571 = vmatprep.subr.mxu0 0.0
        %572 = vmatpush2.msra.mxu0 0.0
        %573 = vmatprep.subr.mxu0 0.0
        %574 = vmatpush2.msra.mxu0 0.0
        %575 = vmatprep.subr.mxu0 0.0
        %576 = vmatpush2.msra.mxu0 0.0
        %577 = vmatprep.subr.mxu0 0.0
        %578 = vmatpush2.msra.mxu0 0.0
        %579 = vmatprep.subr.mxu0 0.0
        %580 = vmatpush2.msra.mxu0 0.0
        %581 = vmatprep.subr.mxu0 0.0
        %582 = vmatpush2.msra.mxu0 0.0
        %583 = vmatprep.subr.mxu0 0.0
        %584 = vmatpush2.msra.mxu0 0.0
        %585 = vmatprep.subr.mxu0 0.0
        %586 = vmatpush2.msra.mxu0 0.0
        %587 = vmatprep.subr.mxu0 0.0
        %588 = vmatpush2.msra.mxu0 0.0
        %589 = vmatprep.subr.mxu0 0.0
        %590 = vmatpush2.msra.mxu0 0.0
        %591 = vmatprep.subr.mxu0 0.0
        %592 = vmatpush2.msra.mxu0 0.0
        %593 = vmatprep.mubr.f32.mxu0 0.0
        %594 = vmatmul.mubr.f32.gmra.mxu0 %v527
        %v595 = vpop.f32.mrf.mxu0
        %v596 = vadd.f32 %v523, %v595
        %v597 = vpop.f32.mrf.mxu0
        %598 = vdwg.mxu0
        %v599 = vmax.f32 %v596, 0.0
        %v600 = vld [vmem:[%s7] sm:$0xff]
        %v601 = vld [vmem:[%s7 + $0x8] sm:$0xff]
        %v602 = vld [vmem:[%s7 + $0x10] sm:$0xff]
        %v603 = vld [vmem:[%s7 + $0x18] sm:$0xff]
        %v604 = vld [vmem:[%s8] sm:$0x1]
        %v606 = vlaneseq
        %v607 = vshrl.u32 %v606, 7
        %v608 = vsub.s32 0, %v607
        %v609 = vrot.slane %v604, %v608
        %v612 = vsel %vm525, %v599, 0
        %614 = vmatprep.subr.mxu0 0.0
        %615 = vmatpush1.msra.mxu0 0.0
        %616 = vmatprep.subr.mxu0 0.0
        %617 = vmatpush1.msra.mxu0 0.0
        %618 = vmatprep.subr.mxu0 0.0
        %619 = vmatpush1.msra.mxu0 0.0
        %620 = vmatprep.subr.mxu0 0.0
        %621 = vmatpush1.msra.mxu0 0.0
        %622 = vmatprep.subr.mxu0 0.0
        %623 = vmatpush1.msra.mxu0 0.0
        %624 = vmatprep.subr.mxu0 0.0
        %625 = vmatpush1.msra.mxu0 0.0
        %626 = vmatprep.subr.mxu0 0.0
        %627 = vmatpush1.msra.mxu0 0.0
        %628 = vmatprep.subr.mxu0 0.0
        %629 = vmatpush1.msra.mxu0 0.0
        %630 = vmatprep.subr.mxu0 0.0
        %631 = vmatpush1.msra.mxu0 0.0
        %632 = vmatprep.subr.mxu0 0.0
        %633 = vmatpush1.msra.mxu0 0.0
        %634 = vmatprep.subr.mxu0 0.0
        %635 = vmatpush1.msra.mxu0 0.0
        %636 = vmatprep.subr.mxu0 0.0
        %637 = vmatpush1.msra.mxu0 0.0
        %638 = vmatprep.subr.mxu0 0.0
        %639 = vmatpush1.msra.mxu0 %v603
        %640 = vmatprep.subr.mxu0 0.0
        %641 = vmatpush1.msra.mxu0 %v602
        %642 = vmatprep.subr.mxu0 0.0
        %643 = vmatpush1.msra.mxu0 %v601
        %644 = vmatprep.subr.mxu0 0.0
        %645 = vmatpush1.msra.mxu0 %v600
        %646 = vmatprep.subr.mxu0 0.0
        %647 = vmatpush2.msra.mxu0 0.0
        %648 = vmatprep.subr.mxu0 0.0
        %649 = vmatpush2.msra.mxu0 0.0
        %650 = vmatprep.subr.mxu0 0.0
        %651 = vmatpush2.msra.mxu0 0.0
        %652 = vmatprep.subr.mxu0 0.0
        %653 = vmatpush2.msra.mxu0 0.0
        %654 = vmatprep.subr.mxu0 0.0
        %655 = vmatpush2.msra.mxu0 0.0
        %656 = vmatprep.subr.mxu0 0.0
        %657 = vmatpush2.msra.mxu0 0.0
        %658 = vmatprep.subr.mxu0 0.0
        %659 = vmatpush2.msra.mxu0 0.0
        %660 = vmatprep.subr.mxu0 0.0
        %661 = vmatpush2.msra.mxu0 0.0
        %662 = vmatprep.subr.mxu0 0.0
        %663 = vmatpush2.msra.mxu0 0.0
        %664 = vmatprep.subr.mxu0 0.0
        %665 = vmatpush2.msra.mxu0 0.0
        %666 = vmatprep.subr.mxu0 0.0
        %667 = vmatpush2.msra.mxu0 0.0
        %668 = vmatprep.subr.mxu0 0.0
        %669 = vmatpush2.msra.mxu0 0.0
        %670 = vmatprep.subr.mxu0 0.0
        %671 = vmatpush2.msra.mxu0 0.0
        %672 = vmatprep.subr.mxu0 0.0
        %673 = vmatpush2.msra.mxu0 0.0
        %674 = vmatprep.subr.mxu0 0.0
        %675 = vmatpush2.msra.mxu0 0.0
        %676 = vmatprep.subr.mxu0 0.0
        %677 = vmatpush2.msra.mxu0 0.0
        %678 = vmatprep.mubr.f32.mxu0 0.0
        %679 = vmatmul.mubr.f32.gmra.mxu0 %v612
        %v680 = vpop.f32.mrf.mxu0
        %v681 = vadd.f32 %v609, %v680
        %v682 = vpop.f32.mrf.mxu0
        %683 = vdwg.mxu0
        %vm684 = vcmask 130048
        %685 = vst.msk [vmem:[%s336] sm:$0xff] %vm684, %v681
        %s686 = sand.u32 %s230, 1
        %s687 = scalar_lea.sflag [#allocation3], %s686
        %s688 = sand.u32 %s230, 1
        %s689 = smul.addr %s688, 8
        %s690 = scalar_lea.vmem [#allocation2], %s689
        // Predicated region
        $region57: #{tpu_custom_call.1} parent=55 // pred_check
          %p691 = pneg %p240
        $region58: #{tpu_custom_call.1} parent=55 // pred_check_branch
          %693 = sbr.rel (%p691) target = $region60
        $region59: #{tpu_custom_call.1} parent=55 // pred_region
          %s695 = ssub.s32 128, 128
          %696 = vsyncadd %s687, %s695
          %s697 = smul.addr %s23, 128
          %s698 = scalar_lea.hbm %s9, %s697
          %s700 = sshll.u32 %s690, 4
          %s701 = int_to_ptr.vmem [resolvable:$true] %s700
          %703 = dma.vmem_to_hbm [thread:$0]  %s701, 128, %s698, %s687
        $region60: #{tpu_custom_call.1} parent=55 // pred_fallthru
          _
      $region56: #{tpu_custom_call.1} parent=5 // pred_fallthru
        _
      %p704 = scmp.le.s32.totalorder 2, %s18
      // Predicated region
      $region61: #{tpu_custom_call.1} parent=5 // pred_check
        %p705 = pneg %p704
      $region62: #{tpu_custom_call.1} parent=5 // pred_check_branch
        %707 = sbr.rel (%p705) target = $region64
      $region63: #{tpu_custom_call.1} parent=5 // pred_region
        %s708 = ssub.s32 %s18, 2
        // Predicated region
        $region65: #{tpu_custom_call.1} parent=63 // pred_check
          %p709 = pneg %p246
        $region66: #{tpu_custom_call.1} parent=63 // pred_check_branch
          %711 = sbr.rel (%p709) target = $region68
        $region67: #{tpu_custom_call.1} parent=63 // pred_region
          %s712 = sand.u32 %s231, 1
          %s713 = scalar_lea.sflag [#allocation3], %s712
          %s714 = sand.u32 %s231, 1
          %s715 = smul.addr %s714, 8
          %s716 = scalar_lea.vmem [#allocation2], %s715
          %717 = dma.done %s713, 128
        $region68: #{tpu_custom_call.1} parent=63 // pred_fallthru
          _
      $region64: #{tpu_custom_call.1} parent=5 // pred_fallthru
        _
    $region6: #{tpu_custom_call.1} parent=1 // loop_footer
      %s22 = sadd.s32 1, %s18
    $region7: #{tpu_custom_call.1} parent=1 // loop_footer_branch
      %17 = sbr.rel target = $region3
    $region8: #{tpu_custom_call.1} parent=1 // loop_exit
      _
    %718 = vsyncpa [#allocation3], 1
    %s719 = scalar_lea.sflag [#allocation3], 1
    %720 = vsyncpa %s719, 1

// kernel: tpu_custom_call.1
$region0: #{tpu_custom_call.1}
  #allocation0 [shape = 'u32[]', space=smem, size = 0x4, offset = 0x4, fixed_abs, tag = 'smem constant byte address 0x4 - core index']
  #allocation1 [shape = 'u32[144,128]{1,0:T(1,128)}', space=vmem, size = 0x12000, scoped, tag = 'internal scratch']
  %s0 = inlined_call_operand.vmem [shape: f32[16,4], index: 0, kind: input, shape index: {}]
  %s1 = inlined_call_operand.vmem [shape: f32[16,2], index: 1, kind: input, shape index: {}]
  %s2 = inlined_call_operand.vmem [shape: f32[4,32], index: 2, kind: input, shape index: {}]
  %s3 = inlined_call_operand.vmem [shape: f32[2,32], index: 3, kind: input, shape index: {}]
  %s4 = inlined_call_operand.vmem [shape: f32[1,32], index: 4, kind: input, shape index: {}]
  %s5 = inlined_call_operand.vmem [shape: f32[32,32], index: 5, kind: input, shape index: {}]
  %s6 = inlined_call_operand.vmem [shape: f32[1,32], index: 6, kind: input, shape index: {}]
  %s7 = inlined_call_operand.vmem [shape: f32[32,16], index: 7, kind: input, shape index: {}]
  %s8 = inlined_call_operand.vmem [shape: f32[1,16], index: 8, kind: input, shape index: {}]
  %s9 = inlined_call_operand.hbm [shape: f32[16,16], index: 9, kind: output, shape index: {}]
  %s10 = sld [smem:[#allocation0]]
  $region69: #{tpu_custom_call.1} parent=0
    _
  %s12 = ssub.s32 1, %s10
  %s13 = scalar_select 0, %s12, %s10
  $region1: #{tpu_custom_call.1} parent=0
    #allocation2 [shape = 'u8[8192]{0}', space=vmem, size = 0x2000, scoped, tag = 'output window, operand 0']
    #allocation3 [shape = 's32[2]{0}', space=sflag, size = 0x8, scoped, tag = 'scoped memory for tpu_custom_call.1']
    %14 = vsyncpa [#allocation3], 0
    %s15 = scalar_lea.sflag [#allocation3], 1
    %16 = vsyncpa %s15, 0
    loop: start=0, step=1, limit=4
    $region2: #{tpu_custom_call.1} parent=1 // loop_pre_header
      _
    $region3: #{tpu_custom_call.1} parent=1 // loop_header
      %s18 = sphi 0, %s22
      %p19 = scmp.ge.s32.totalorder %s18, 4
      %s28 = sphi 0, %s30
      %s31 = sphi 0, %s28
      %s32 = sphi 0, %s31
      %s48 = sphi 0, %s32
      %s54 = sphi 0, %s56
      %s57 = sphi 0, %s54
      %s58 = sphi 0, %s57
      %s74 = sphi 0, %s58
      %s78 = sphi 0, %s78
      %s80 = sphi 0, %s78
      %s81 = sphi 0, %s80
      %s95 = sphi 0, %s81
      %s99 = sphi 0, %s99
      %s101 = sphi 0, %s99
      %s102 = sphi 0, %s101
      %s116 = sphi 0, %s102
      %s120 = sphi 0, %s120
      %s122 = sphi 0, %s120
      %s123 = sphi 0, %s122
      %s137 = sphi 0, %s123
      %s141 = sphi 0, %s141
      %s143 = sphi 0, %s141
      %s144 = sphi 0, %s143
      %s158 = sphi 0, %s144
      %s162 = sphi 0, %s162
      %s164 = sphi 0, %s162
      %s165 = sphi 0, %s164
      %s179 = sphi 0, %s165
      %s183 = sphi 0, %s183
      %s185 = sphi 0, %s183
      %s186 = sphi 0, %s185
      %s200 = sphi 0, %s186
      %s204 = sphi 0, %s204
      %s206 = sphi 0, %s204
      %s207 = sphi 0, %s206
      %s221 = sphi 0, %s207
      %s227 = sphi 0, %s229
      %s230 = sphi 0, %s227
      %s231 = sphi 0, %s230
      %s247 = sphi 0, %s231
    $region4: #{tpu_custom_call.1} parent=1 // loop_header_branch
      %21 = sbr.rel (%p19) target = $region8
    $region5: #{tpu_custom_call.1} parent=1 // loop_body
      %s23 = ssub.s32 %s18, 1
      %s24 = ssub.s32 %s18, 2
      %s25 = sadd.s32 %s18, 1
      %s26 = ssub.s32 %s18, %s25
      %p27 = scmp.eq.s32.totalorder %s26, 0
      %s29 = sadd.s32 %s28, 1
      %s30 = scalar_select %p27, %s28, %s29
      %p33 = pneg %p27
      %p34 = scmp.eq.s32.totalorder %s18, 1
      %p35 = por %p33, %p34
      %p36 = scmp.ne.s32.totalorder %s28, %s31
      %p37 = scmp.eq.s32.totalorder %s18, 0
      %p38 = por %p36, %p37
      %p39 = scmp.ne.s32.totalorder %s28, %s31
      %p40 = scmp.eq.s32.totalorder %s23, 1
      %p41 = por %p39, %p40
      %p42 = scmp.ne.s32.totalorder %s31, %s32
      %p43 = scmp.eq.s32.totalorder %s23, 0
      %p44 = por %p42, %p43
      %p45 = scmp.ne.s32.totalorder %s31, %s32
      %p46 = scmp.eq.s32.totalorder %s24, 1
      %p47 = por %p45, %p46
      %p49 = scmp.ne.s32.totalorder %s32, %s48
      %p50 = scmp.eq.s32.totalorder %s24, 0
      %p51 = por %p49, %p50
      %s52 = ssub.s32 %s18, %s25
      %p53 = scmp.eq.s32.totalorder %s52, 0
      %s55 = sadd.s32 %s54, 1
      %s56 = scalar_select %p53, %s54, %s55
      %p59 = pneg %p53
      %p60 = scmp.eq.s32.totalorder %s18, 1
      %p61 = por %p59, %p60
      %p62 = scmp.ne.s32.totalorder %s54, %s57
      %p63 = scmp.eq.s32.totalorder %s18, 0
      %p64 = por %p62, %p63
      %p65 = scmp.ne.s32.totalorder %s54, %s57
      %p66 = scmp.eq.s32.totalorder %s23, 1
      %p67 = por %p65, %p66
      %p68 = scmp.ne.s32.totalorder %s57, %s58
      %p69 = scmp.eq.s32.totalorder %s23, 0
      %p70 = por %p68, %p69
      %p71 = scmp.ne.s32.totalorder %s57, %s58
      %p72 = scmp.eq.s32.totalorder %s24, 1
      %p73 = por %p71, %p72
      %p75 = scmp.ne.s32.totalorder %s58, %s74
      %p76 = scmp.eq.s32.totalorder %s24, 0
      %p77 = por %p75, %p76
      %s79 = sadd.s32 %s78, 1
      %p82 = scmp.eq.s32.totalorder %s18, 1
      %p83 = scmp.ne.s32.totalorder %s78, %s80
      %p84 = scmp.eq.s32.totalorder %s18, 0
      %p85 = por %p83, %p84
      %p86 = scmp.ne.s32.totalorder %s78, %s80
      %p87 = scmp.eq.s32.totalorder %s23, 1
      %p88 = por %p86, %p87
      %p89 = scmp.ne.s32.totalorder %s80, %s81
      %p90 = scmp.eq.s32.totalorder %s23, 0
      %p91 = por %p89, %p90
      %p92 = scmp.ne.s32.totalorder %s80, %s81
      %p93 = scmp.eq.s32.totalorder %s24, 1
      %p94 = por %p92, %p93
      %p96 = scmp.ne.s32.totalorder %s81, %s95
      %p97 = scmp.eq.s32.totalorder %s24, 0
      %p98 = por %p96, %p97
      %s100 = sadd.s32 %s99, 1
      %p103 = scmp.eq.s32.totalorder %s18, 1
      %p104 = scmp.ne.s32.totalorder %s99, %s101
      %p105 = scmp.eq.s32.totalorder %s18, 0
      %p106 = por %p104, %p105
      %p107 = scmp.ne.s32.totalorder %s99, %s101
      %p108 = scmp.eq.s32.totalorder %s23, 1
      %p109 = por %p107, %p108
      %p110 = scmp.ne.s32.totalorder %s101, %s102
      %p111 = scmp.eq.s32.totalorder %s23, 0
      %p112 = por %p110, %p111
      %p113 = scmp.ne.s32.totalorder %s101, %s102
      %p114 = scmp.eq.s32.totalorder %s24, 1
      %p115 = por %p113, %p114
      %p117 = scmp.ne.s32.totalorder %s102, %s116
      %p118 = scmp.eq.s32.totalorder %s24, 0
      %p119 = por %p117, %p118
      %s121 = sadd.s32 %s120, 1
      %p124 = scmp.eq.s32.totalorder %s18, 1
      %p125 = scmp.ne.s32.totalorder %s120, %s122
      %p126 = scmp.eq.s32.totalorder %s18, 0
      %p127 = por %p125, %p126
      %p128 = scmp.ne.s32.totalorder %s120, %s122
      %p129 = scmp.eq.s32.totalorder %s23, 1
      %p130 = por %p128, %p129
      %p131 = scmp.ne.s32.totalorder %s122, %s123
      %p132 = scmp.eq.s32.totalorder %s23, 0
      %p133 = por %p131, %p132
      %p134 = scmp.ne.s32.totalorder %s122, %s123
      %p135 = scmp.eq.s32.totalorder %s24, 1
      %p136 = por %p134, %p135
      %p138 = scmp.ne.s32.totalorder %s123, %s137
      %p139 = scmp.eq.s32.totalorder %s24, 0
      %p140 = por %p138, %p139
      %s142 = sadd.s32 %s141, 1
      %p145 = scmp.eq.s32.totalorder %s18, 1
      %p146 = scmp.ne.s32.totalorder %s141, %s143
      %p147 = scmp.eq.s32.totalorder %s18, 0
      %p148 = por %p146, %p147
      %p149 = scmp.ne.s32.totalorder %s141, %s143
      %p150 = scmp.eq.s32.totalorder %s23, 1
      %p151 = por %p149, %p150
      %p152 = scmp.ne.s32.totalorder %s143, %s144
      %p153 = scmp.eq.s32.totalorder %s23, 0
      %p154 = por %p152, %p153
      %p155 = scmp.ne.s32.totalorder %s143, %s144
      %p156 = scmp.eq.s32.totalorder %s24, 1
      %p157 = por %p155, %p156
      %p159 = scmp.ne.s32.totalorder %s144, %s158
      %p160 = scmp.eq.s32.totalorder %s24, 0
      %p161 = por %p159, %p160
      %s163 = sadd.s32 %s162, 1
      %p166 = scmp.eq.s32.totalorder %s18, 1
      %p167 = scmp.ne.s32.totalorder %s162, %s164
      %p168 = scmp.eq.s32.totalorder %s18, 0
      %p169 = por %p167, %p168
      %p170 = scmp.ne.s32.totalorder %s162, %s164
      %p171 = scmp.eq.s32.totalorder %s23, 1
      %p172 = por %p170, %p171
      %p173 = scmp.ne.s32.totalorder %s164, %s165
      %p174 = scmp.eq.s32.totalorder %s23, 0
      %p175 = por %p173, %p174
      %p176 = scmp.ne.s32.totalorder %s164, %s165
      %p177 = scmp.eq.s32.totalorder %s24, 1
      %p178 = por %p176, %p177
      %p180 = scmp.ne.s32.totalorder %s165, %s179
      %p181 = scmp.eq.s32.totalorder %s24, 0
      %p182 = por %p180, %p181
      %s184 = sadd.s32 %s183, 1
      %p187 = scmp.eq.s32.totalorder %s18, 1
      %p188 = scmp.ne.s32.totalorder %s183, %s185
      %p189 = scmp.eq.s32.totalorder %s18, 0
      %p190 = por %p188, %p189
      %p191 = scmp.ne.s32.totalorder %s183, %s185
      %p192 = scmp.eq.s32.totalorder %s23, 1
      %p193 = por %p191, %p192
      %p194 = scmp.ne.s32.totalorder %s185, %s186
      %p195 = scmp.eq.s32.totalorder %s23, 0
      %p196 = por %p194, %p195
      %p197 = scmp.ne.s32.totalorder %s185, %s186
      %p198 = scmp.eq.s32.totalorder %s24, 1
      %p199 = por %p197, %p198
      %p201 = scmp.ne.s32.totalorder %s186, %s200
      %p202 = scmp.eq.s32.totalorder %s24, 0
      %p203 = por %p201, %p202
      %s205 = sadd.s32 %s204, 1
      %p208 = scmp.eq.s32.totalorder %s18, 1
      %p209 = scmp.ne.s32.totalorder %s204, %s206
      %p210 = scmp.eq.s32.totalorder %s18, 0
      %p211 = por %p209, %p210
      %p212 = scmp.ne.s32.totalorder %s204, %s206
      %p213 = scmp.eq.s32.totalorder %s23, 1
      %p214 = por %p212, %p213
      %p215 = scmp.ne.s32.totalorder %s206, %s207
      %p216 = scmp.eq.s32.totalorder %s23, 0
      %p217 = por %p215, %p216
      %p218 = scmp.ne.s32.totalorder %s206, %s207
      %p219 = scmp.eq.s32.totalorder %s24, 1
      %p220 = por %p218, %p219
      %p222 = scmp.ne.s32.totalorder %s207, %s221
      %p223 = scmp.eq.s32.totalorder %s24, 0
      %p224 = por %p222, %p223
      %s225 = ssub.s32 %s18, %s25
      %p226 = scmp.eq.s32.totalorder %s225, 0
      %s228 = sadd.s32 %s227, 1
      %s229 = scalar_select %p226, %s227, %s228
      %p232 = pneg %p226
      %p233 = scmp.eq.s32.totalorder %s18, 1
      %p234 = por %p232, %p233
      %p235 = scmp.ne.s32.totalorder %s227, %s230
      %p236 = scmp.eq.s32.totalorder %s18, 0
      %p237 = por %p235, %p236
      %p238 = scmp.ne.s32.totalorder %s227, %s230
      %p239 = scmp.eq.s32.totalorder %s23, 1
      %p240 = por %p238, %p239
      %p241 = scmp.ne.s32.totalorder %s230, %s231
      %p242 = scmp.eq.s32.totalorder %s23, 0
      %p243 = por %p241, %p242
      %p244 = scmp.ne.s32.totalorder %s230, %s231
      %p245 = scmp.eq.s32.totalorder %s24, 1
      %p246 = por %p244, %p245
      %p248 = scmp.ne.s32.totalorder %s231, %s247
      %p249 = scmp.eq.s32.totalorder %s24, 0
      %p250 = por %p248, %p249
      %p251 = scmp.le.s32.totalorder 1, %s18
      %p252 = scmp.lt.s32.totalorder %s18, 3
      %p253 = pnand %p251, %p252
      %p254 = pneg %p253
      // Predicated region
      $region9: #{tpu_custom_call.1} parent=5 // pred_check
        _
      $region10: #{tpu_custom_call.1} parent=5 // pred_check_branch
        %256 = sbr.rel (%p253) target = $region12
      $region11: #{tpu_custom_call.1} parent=5 // pred_region
        %s257 = ssub.s32 %s18, 1
        // Predicated region
        $region13: #{tpu_custom_call.1} parent=11 // pred_check
          %p258 = pneg %p91
        $region14: #{tpu_custom_call.1} parent=11 // pred_check_branch
          %260 = sbr.rel (%p258) target = $region16
        $region15: #{tpu_custom_call.1} parent=11 // pred_region
          _
        $region16: #{tpu_custom_call.1} parent=11 // pred_fallthru
          _
        // Predicated region
        $region17: #{tpu_custom_call.1} parent=11 // pred_check
          %p261 = pneg %p112
        $region18: #{tpu_custom_call.1} parent=11 // pred_check_branch
          %263 = sbr.rel (%p261) target = $region20
        $region19: #{tpu_custom_call.1} parent=11 // pred_region
          _
        $region20: #{tpu_custom_call.1} parent=11 // pred_fallthru
          _
        // Predicated region
        $region21: #{tpu_custom_call.1} parent=11 // pred_check
          %p264 = pneg %p133
        $region22: #{tpu_custom_call.1} parent=11 // pred_check_branch
          %266 = sbr.rel (%p264) target = $region24
        $region23: #{tpu_custom_call.1} parent=11 // pred_region
          _
        $region24: #{tpu_custom_call.1} parent=11 // pred_fallthru
          _
        // Predicated region
        $region25: #{tpu_custom_call.1} parent=11 // pred_check
          %p267 = pneg %p154
        $region26: #{tpu_custom_call.1} parent=11 // pred_check_branch
          %269 = sbr.rel (%p267) target = $region28
        $region27: #{tpu_custom_call.1} parent=11 // pred_region
          _
        $region28: #{tpu_custom_call.1} parent=11 // pred_fallthru
          _
        // Predicated region
        $region29: #{tpu_custom_call.1} parent=11 // pred_check
          %p270 = pneg %p175
        $region30: #{tpu_custom_call.1} parent=11 // pred_check_branch
          %272 = sbr.rel (%p270) target = $region32
        $region31: #{tpu_custom_call.1} parent=11 // pred_region
          _
        $region32: #{tpu_custom_call.1} parent=11 // pred_fallthru
          _
        // Predicated region
        $region33: #{tpu_custom_call.1} parent=11 // pred_check
          %p273 = pneg %p196
        $region34: #{tpu_custom_call.1} parent=11 // pred_check_branch
          %275 = sbr.rel (%p273) target = $region36
        $region35: #{tpu_custom_call.1} parent=11 // pred_region
          _
        $region36: #{tpu_custom_call.1} parent=11 // pred_fallthru
          _
        // Predicated region
        $region37: #{tpu_custom_call.1} parent=11 // pred_check
          %p276 = pneg %p217
        $region38: #{tpu_custom_call.1} parent=11 // pred_check_branch
          %278 = sbr.rel (%p276) target = $region40
        $region39: #{tpu_custom_call.1} parent=11 // pred_region
          _
        $region40: #{tpu_custom_call.1} parent=11 // pred_fallthru
          _
      $region12: #{tpu_custom_call.1} parent=5 // pred_fallthru
        _
      %p279 = scmp.lt.s32.totalorder %s18, 2
      // Predicated region
      $region41: #{tpu_custom_call.1} parent=5 // pred_check
        %p280 = pneg %p279
      $region42: #{tpu_custom_call.1} parent=5 // pred_check_branch
        %282 = sbr.rel (%p280) target = $region44
      $region43: #{tpu_custom_call.1} parent=5 // pred_region
        // Predicated region
        $region45: #{tpu_custom_call.1} parent=43 // pred_check
          %p283 = pneg %p38
        $region46: #{tpu_custom_call.1} parent=43 // pred_check_branch
          %285 = sbr.rel (%p283) target = $region48
        $region47: #{tpu_custom_call.1} parent=43 // pred_region
          %p286 = scmp.lt.s32.totalorder %s18, 1
          %s287 = scalar_select %p286, %s18, 1
          %s288 = smul.addr %s287, 8
          %s289 = scalar_lea.vmem %s0, %s288
        $region48: #{tpu_custom_call.1} parent=43 // pred_fallthru
          _
        // Predicated region
        $region49: #{tpu_custom_call.1} parent=43 // pred_check
          %p290 = pneg %p64
        $region50: #{tpu_custom_call.1} parent=43 // pred_check_branch
          %292 = sbr.rel (%p290) target = $region52
        $region51: #{tpu_custom_call.1} parent=43 // pred_region
          %p293 = scmp.lt.s32.totalorder %s18, 1
          %s294 = scalar_select %p293, %s18, 1
          %s295 = smul.addr %s294, 8
          %s296 = scalar_lea.vmem %s1, %s295
        $region52: #{tpu_custom_call.1} parent=43 // pred_fallthru
          _
      $region44: #{tpu_custom_call.1} parent=5 // pred_fallthru
        _
      %p297 = scmp.le.s32.totalorder 1, %s18
      %p298 = scmp.lt.s32.totalorder %s18, 3
      %p299 = pnand %p297, %p298
      %p300 = pneg %p299
      // Predicated region
      $region53: #{tpu_custom_call.1} parent=5 // pred_check
        _
      $region54: #{tpu_custom_call.1} parent=5 // pred_check_branch
        %302 = sbr.rel (%p299) target = $region56
      $region55: #{tpu_custom_call.1} parent=5 // pred_region
        %s303 = ssub.s32 %s18, 1
        %p304 = scmp.lt.s32.totalorder %s23, 1
        %s305 = scalar_select %p304, %s23, 1
        %s306 = smul.addr %s305, 8
        %s307 = scalar_lea.vmem %s0, %s306
        %p308 = pneg %p44
        %p309 = pneg %p41
        %p310 = scmp.lt.s32.totalorder %s23, 1
        %s311 = scalar_select %p310, %s23, 1
        %s312 = smul.addr %s311, 8
        %s313 = scalar_lea.vmem %s1, %s312
        %p314 = pneg %p70
        %p315 = pneg %p67
        %p316 = pneg %p91
        %p317 = pneg %p88
        %p318 = pneg %p112
        %p319 = pneg %p109
        %p320 = pneg %p133
        %p321 = pneg %p130
        %p322 = pneg %p154
        %p323 = pneg %p151
        %p324 = pneg %p175
        %p325 = pneg %p172
        %p326 = pneg %p196
        %p327 = pneg %p193
        %p328 = pneg %p217
        %p329 = pneg %p214
        %p330 = pneg %p243
        %p331 = pneg %p240
        %s332 = sand.u32 %s230, 1
        %s333 = scalar_lea.sflag [#allocation3], %s332
        %s334 = sand.u32 %s230, 1
        %s335 = smul.addr %s334, 8
        %s336 = scalar_lea.vmem [#allocation2], %s335
        %p337 = scmp.lt.s32.totalorder %s23, 1
        %s338 = scalar_select %p337, %s23, 1
        %s339 = smul.addr %s338, 8
        %s340 = scalar_lea.vmem %s0, %s339
        %p341 = scmp.lt.s32.totalorder %s23, 1
        %s342 = scalar_select %p341, %s23, 1
        %s343 = smul.addr %s342, 8
        %s344 = scalar_lea.vmem %s1, %s343
        %v345 = vld [vmem:[%s340] sm:$0xff]
        %v346 = vld [vmem:[%s2] sm:$0xf]
        %v347 = vld [vmem:[%s344] sm:$0xff]
        %v348 = vld [vmem:[%s3] sm:$0x3]
        %vm349 = vcmask 15360
        %v351 = vsel %vm349, %v347, 0
        %vm353 = vcmask 1041408
        %v355 = vsel %vm353, %v348, 0
        %357 = vmatprep.subr.mxu0 0.0
        %358 = vmatpush1.msra.mxu0 0.0
        %359 = vmatprep.subr.mxu0 0.0
        %360 = vmatpush1.msra.mxu0 0.0
        %361 = vmatprep.subr.mxu0 0.0
        %362 = vmatpush1.msra.mxu0 0.0
        %363 = vmatprep.subr.mxu0 0.0
        %364 = vmatpush1.msra.mxu0 0.0
        %365 = vmatprep.subr.mxu0 0.0
        %366 = vmatpush1.msra.mxu0 0.0
        %367 = vmatprep.subr.mxu0 0.0
        %368 = vmatpush1.msra.mxu0 0.0
        %369 = vmatprep.subr.mxu0 0.0
        %370 = vmatpush1.msra.mxu0 0.0
        %371 = vmatprep.subr.mxu0 0.0
        %372 = vmatpush1.msra.mxu0 0.0
        %373 = vmatprep.subr.mxu0 0.0
        %374 = vmatpush1.msra.mxu0 0.0
        %375 = vmatprep.subr.mxu0 0.0
        %376 = vmatpush1.msra.mxu0 0.0
        %377 = vmatprep.subr.mxu0 0.0
        %378 = vmatpush1.msra.mxu0 0.0
        %379 = vmatprep.subr.mxu0 0.0
        %380 = vmatpush1.msra.mxu0 0.0
        %381 = vmatprep.subr.mxu0 0.0
        %382 = vmatpush1.msra.mxu0 0.0
        %383 = vmatprep.subr.mxu0 0.0
        %384 = vmatpush1.msra.mxu0 0.0
        %385 = vmatprep.subr.mxu0 0.0
        %386 = vmatpush1.msra.mxu0 0.0
        %387 = vmatprep.subr.mxu0 0.0
        %388 = vmatpush1.msra.mxu0 %v355
        %389 = vmatprep.subr.mxu0 0.0
        %390 = vmatpush2.msra.mxu0 0.0
        %391 = vmatprep.subr.mxu0 0.0
        %392 = vmatpush2.msra.mxu0 0.0
        %393 = vmatprep.subr.mxu0 0.0
        %394 = vmatpush2.msra.mxu0 0.0
        %395 = vmatprep.subr.mxu0 0.0
        %396 = vmatpush2.msra.mxu0 0.0
        %397 = vmatprep.subr.mxu0 0.0
        %398 = vmatpush2.msra.mxu0 0.0
        %399 = vmatprep.subr.mxu0 0.0
        %400 = vmatpush2.msra.mxu0 0.0
        %401 = vmatprep.subr.mxu0 0.0
        %402 = vmatpush2.msra.mxu0 0.0
        %403 = vmatprep.subr.mxu0 0.0
        %404 = vmatpush2.msra.mxu0 0.0
        %405 = vmatprep.subr.mxu0 0.0
        %406 = vmatpush2.msra.mxu0 0.0
        %407 = vmatprep.subr.mxu0 0.0
        %408 = vmatpush2.msra.mxu0 0.0
        %409 = vmatprep.subr.mxu0 0.0
        %410 = vmatpush2.msra.mxu0 0.0
        %411 = vmatprep.subr.mxu0 0.0
        %412 = vmatpush2.msra.mxu0 0.0
        %413 = vmatprep.subr.mxu0 0.0
        %414 = vmatpush2.msra.mxu0 0.0
        %415 = vmatprep.subr.mxu0 0.0
        %416 = vmatpush2.msra.mxu0 0.0
        %417 = vmatprep.subr.mxu0 0.0
        %418 = vmatpush2.msra.mxu0 0.0
        %419 = vmatprep.subr.mxu0 0.0
        %420 = vmatpush2.msra.mxu0 0.0
        %421 = vmatprep.mubr.f32.mxu0 0.0
        %422 = vmatmul.mubr.f32.gmra.mxu0 %v351
        %v423 = vpop.f32.mrf.mxu0
        %v424 = vadd.f32 0.0, %v423
        %v425 = vpop.f32.mrf.mxu0
        %426 = vdwg.mxu0
        %vm427 = vcmask 31744
        %v429 = vsel %vm427, %v345, 0
        %vm431 = vcmask 1043456
        %v433 = vsel %vm431, %v346, 0
        %435 = vmatprep.subr.mxu0 0.0
        %436 = vmatpush1.msra.mxu0 0.0
        %437 = vmatprep.subr.mxu0 0.0
        %438 = vmatpush1.msra.mxu0 0.0
        %439 = vmatprep.subr.mxu0 0.0
        %440 = vmatpush1.msra.mxu0 0.0
        %441 = vmatprep.subr.mxu0 0.0
        %442 = vmatpush1.msra.mxu0 0.0
        %443 = vmatprep.subr.mxu0 0.0
        %444 = vmatpush1.msra.mxu0 0.0
        %445 = vmatprep.subr.mxu0 0.0
        %446 = vmatpush1.msra.mxu0 0.0
        %447 = vmatprep.subr.mxu0 0.0
        %448 = vmatpush1.msra.mxu0 0.0
        %449 = vmatprep.subr.mxu0 0.0
        %450 = vmatpush1.msra.mxu0 0.0
        %451 = vmatprep.subr.mxu0 0.0
        %452 = vmatpush1.msra.mxu0 0.0
        %453 = vmatprep.subr.mxu0 0.0
        %454 = vmatpush1.msra.mxu0 0.0
        %455 = vmatprep.subr.mxu0 0.0
        %456 = vmatpush1.msra.mxu0 0.0
        %457 = vmatprep.subr.mxu0 0.0
        %458 = vmatpush1.msra.mxu0 0.0
        %459 = vmatprep.subr.mxu0 0.0
        %460 = vmatpush1.msra.mxu0 0.0
        %461 = vmatprep.subr.mxu0 0.0
        %462 = vmatpush1.msra.mxu0 0.0
        %463 = vmatprep.subr.mxu0 0.0
        %464 = vmatpush1.msra.mxu0 0.0
        %465 = vmatprep.subr.mxu0 0.0
        %466 = vmatpush1.msra.mxu0 %v433
        %467 = vmatprep.subr.mxu0 0.0
        %468 = vmatpush2.msra.mxu0 0.0
        %469 = vmatprep.subr.mxu0 0.0
        %470 = vmatpush2.msra.mxu0 0.0
        %471 = vmatprep.subr.mxu0 0.0
        %472 = vmatpush2.msra.mxu0 0.0
        %473 = vmatprep.subr.mxu0 0.0
        %474 = vmatpush2.msra.mxu0 0.0
        %475 = vmatprep.subr.mxu0 0.0
        %476 = vmatpush2.msra.mxu0 0.0
        %477 = vmatprep.subr.mxu0 0.0
        %478 = vmatpush2.msra.mxu0 0.0
        %479 = vmatprep.subr.mxu0 0.0
        %480 = vmatpush2.msra.mxu0 0.0
        %481 = vmatprep.subr.mxu0 0.0
        %482 = vmatpush2.msra.mxu0 0.0
        %483 = vmatprep.subr.mxu0 0.0
        %484 = vmatpush2.msra.mxu0 0.0
        %485 = vmatprep.subr.mxu0 0.0
        %486 = vmatpush2.msra.mxu0 0.0
        %487 = vmatprep.subr.mxu0 0.0
        %488 = vmatpush2.msra.mxu0 0.0
        %489 = vmatprep.subr.mxu0 0.0
        %490 = vmatpush2.msra.mxu0 0.0
        %491 = vmatprep.subr.mxu0 0.0
        %492 = vmatpush2.msra.mxu0 0.0
        %493 = vmatprep.subr.mxu0 0.0
        %494 = vmatpush2.msra.mxu0 0.0
        %495 = vmatprep.subr.mxu0 0.0
        %496 = vmatpush2.msra.mxu0 0.0
        %497 = vmatprep.subr.mxu0 0.0
        %498 = vmatpush2.msra.mxu0 0.0
        %499 = vmatprep.mubr.f32.mxu0 0.0
        %500 = vmatmul.mubr.f32.gmra.mxu0 %v429
        %v501 = vpop.f32.mrf.mxu0
        %v502 = vadd.f32 %v424, %v501
        %v503 = vpop.f32.mrf.mxu0
        %504 = vdwg.mxu0
        %v505 = vld [vmem:[%s4] sm:$0x1]
        %v507 = vlaneseq
        %v508 = vshrl.u32 %v507, 7
        %v509 = vsub.s32 0, %v508
        %v510 = vrot.slane %v505, %v509
        %v512 = vadd.f32 %v502, %v510
        %v513 = vmax.f32 %v512, 0.0
        %v514 = vld [vmem:[%s5] sm:$0xff]
        %v515 = vld [vmem:[%s5 + $0x8] sm:$0xff]
        %v516 = vld [vmem:[%s5 + $0x10] sm:$0xff]
        %v517 = vld [vmem:[%s5 + $0x18] sm:$0xff]
        %v518 = vld [vmem:[%s6] sm:$0x1]
        %v520 = vlaneseq
        %v521 = vshrl.u32 %v520, 7
        %v522 = vsub.s32 0, %v521
        %v523 = vrot.slane %v518, %v522
        %vm525 = vcmask 261120
        %v527 = vsel %vm525, %v513, 0
        %529 = vmatprep.subr.mxu0 0.0
        %530 = vmatpush1.msra.mxu0 0.0
        %531 = vmatprep.subr.mxu0 0.0
        %532 = vmatpush1.msra.mxu0 0.0
        %533 = vmatprep.subr.mxu0 0.0
        %534 = vmatpush1.msra.mxu0 0.0
        %535 = vmatprep.subr.mxu0 0.0
        %536 = vmatpush1.msra.mxu0 0.0
        %537 = vmatprep.subr.mxu0 0.0
        %538 = vmatpush1.msra.mxu0 0.0
        %539 = vmatprep.subr.mxu0 0.0
        %540 = vmatpush1.msra.mxu0 0.0
        %541 = vmatprep.subr.mxu0 0.0
        %542 = vmatpush1.msra.mxu0 0.0
        %543 = vmatprep.subr.mxu0 0.0
        %544 = vmatpush1.msra.mxu0 0.0
        %545 = vmatprep.subr.mxu0 0.0
        %546 = vmatpush1.msra.mxu0 0.0
        %547 = vmatprep.subr.mxu0 0.0
        %548 = vmatpush1.msra.mxu0 0.0
        %549 = vmatprep.subr.mxu0 0.0
        %550 = vmatpush1.msra.mxu0 0.0
        %551 = vmatprep.subr.mxu0 0.0
        %552 = vmatpush1.msra.mxu0 0.0
        %553 = vmatprep.subr.mxu0 0.0
        %554 = vmatpush1.msra.mxu0 %v517
        %555 = vmatprep.subr.mxu0 0.0
        %556 = vmatpush1.msra.mxu0 %v516
        %557 = vmatprep.subr.mxu0 0.0
        %558 = vmatpush1.msra.mxu0 %v515
        %559 = vmatprep.subr.mxu0 0.0
        %560 = vmatpush1.msra.mxu0 %v514
        %561 = vmatprep.subr.mxu0 0.0
        %562 = vmatpush2.msra.mxu0 0.0
        %563 = vmatprep.subr.mxu0 0.0
        %564 = vmatpush2.msra.mxu0 0.0
        %565 = vmatprep.subr.mxu0 0.0
        %566 = vmatpush2.msra.mxu0 0.0
        %567 = vmatprep.subr.mxu0 0.0
        %568 = vmatpush2.msra.mxu0 0.0
        %569 = vmatprep.subr.mxu0 0.0
        %570 = vmatpush2.msra.mxu0 0.0
        %571 = vmatprep.subr.mxu0 0.0
        %572 = vmatpush2.msra.mxu0 0.0
        %573 = vmatprep.subr.mxu0 0.0
        %574 = vmatpush2.msra.mxu0 0.0
        %575 = vmatprep.subr.mxu0 0.0
        %576 = vmatpush2.msra.mxu0 0.0
        %577 = vmatprep.subr.mxu0 0.0
        %578 = vmatpush2.msra.mxu0 0.0
        %579 = vmatprep.subr.mxu0 0.0
        %580 = vmatpush2.msra.mxu0 0.0
        %581 = vmatprep.subr.mxu0 0.0
        %582 = vmatpush2.msra.mxu0 0.0
        %583 = vmatprep.subr.mxu0 0.0
        %584 = vmatpush2.msra.mxu0 0.0
        %585 = vmatprep.subr.mxu0 0.0
        %586 = vmatpush2.msra.mxu0 0.0
        %587 = vmatprep.subr.mxu0 0.0
        %588 = vmatpush2.msra.mxu0 0.0
        %589 = vmatprep.subr.mxu0 0.0
        %590 = vmatpush2.msra.mxu0 0.0
        %591 = vmatprep.subr.mxu0 0.0
        %592 = vmatpush2.msra.mxu0 0.0
        %593 = vmatprep.mubr.f32.mxu0 0.0
        %594 = vmatmul.mubr.f32.gmra.mxu0 %v527
        %v595 = vpop.f32.mrf.mxu0
        %v596 = vadd.f32 %v523, %v595
        %v597 = vpop.f32.mrf.mxu0
        %598 = vdwg.mxu0
        %v599 = vmax.f32 %v596, 0.0
        %v600 = vld [vmem:[%s7] sm:$0xff]
        %v601 = vld [vmem:[%s7 + $0x8] sm:$0xff]
        %v602 = vld [vmem:[%s7 + $0x10] sm:$0xff]
        %v603 = vld [vmem:[%s7 + $0x18] sm:$0xff]
        %v604 = vld [vmem:[%s8] sm:$0x1]
        %v606 = vlaneseq
        %v607 = vshrl.u32 %v606, 7
        %v608 = vsub.s32 0, %v607
        %v609 = vrot.slane %v604, %v608
        %v612 = vsel %vm525, %v599, 0
        %614 = vmatprep.subr.mxu0 0.0
        %615 = vmatpush1.msra.mxu0 0.0
        %616 = vmatprep.subr.mxu0 0.0
        %617 = vmatpush1.msra.mxu0 0.0
        %618 = vmatprep.subr.mxu0 0.0
        %619 = vmatpush1.msra.mxu0 0.0
        %620 = vmatprep.subr.mxu0 0.0
        %621 = vmatpush1.msra.mxu0 0.0
        %622 = vmatprep.subr.mxu0 0.0
        %623 = vmatpush1.msra.mxu0 0.0
        %624 = vmatprep.subr.mxu0 0.0
        %625 = vmatpush1.msra.mxu0 0.0
        %626 = vmatprep.subr.mxu0 0.0
        %627 = vmatpush1.msra.mxu0 0.0
        %628 = vmatprep.subr.mxu0 0.0
        %629 = vmatpush1.msra.mxu0 0.0
        %630 = vmatprep.subr.mxu0 0.0
        %631 = vmatpush1.msra.mxu0 0.0
        %632 = vmatprep.subr.mxu0 0.0
        %633 = vmatpush1.msra.mxu0 0.0
        %634 = vmatprep.subr.mxu0 0.0
        %635 = vmatpush1.msra.mxu0 0.0
        %636 = vmatprep.subr.mxu0 0.0
        %637 = vmatpush1.msra.mxu0 0.0
        %638 = vmatprep.subr.mxu0 0.0
        %639 = vmatpush1.msra.mxu0 %v603
        %640 = vmatprep.subr.mxu0 0.0
        %641 = vmatpush1.msra.mxu0 %v602
        %642 = vmatprep.subr.mxu0 0.0
        %643 = vmatpush1.msra.mxu0 %v601
        %644 = vmatprep.subr.mxu0 0.0
        %645 = vmatpush1.msra.mxu0 %v600
        %646 = vmatprep.subr.mxu0 0.0
        %647 = vmatpush2.msra.mxu0 0.0
        %648 = vmatprep.subr.mxu0 0.0
        %649 = vmatpush2.msra.mxu0 0.0
        %650 = vmatprep.subr.mxu0 0.0
        %651 = vmatpush2.msra.mxu0 0.0
        %652 = vmatprep.subr.mxu0 0.0
        %653 = vmatpush2.msra.mxu0 0.0
        %654 = vmatprep.subr.mxu0 0.0
        %655 = vmatpush2.msra.mxu0 0.0
        %656 = vmatprep.subr.mxu0 0.0
        %657 = vmatpush2.msra.mxu0 0.0
        %658 = vmatprep.subr.mxu0 0.0
        %659 = vmatpush2.msra.mxu0 0.0
        %660 = vmatprep.subr.mxu0 0.0
        %661 = vmatpush2.msra.mxu0 0.0
        %662 = vmatprep.subr.mxu0 0.0
        %663 = vmatpush2.msra.mxu0 0.0
        %664 = vmatprep.subr.mxu0 0.0
        %665 = vmatpush2.msra.mxu0 0.0
        %666 = vmatprep.subr.mxu0 0.0
        %667 = vmatpush2.msra.mxu0 0.0
        %668 = vmatprep.subr.mxu0 0.0
        %669 = vmatpush2.msra.mxu0 0.0
        %670 = vmatprep.subr.mxu0 0.0
        %671 = vmatpush2.msra.mxu0 0.0
        %672 = vmatprep.subr.mxu0 0.0
        %673 = vmatpush2.msra.mxu0 0.0
        %674 = vmatprep.subr.mxu0 0.0
        %675 = vmatpush2.msra.mxu0 0.0
        %676 = vmatprep.subr.mxu0 0.0
        %677 = vmatpush2.msra.mxu0 0.0
        %678 = vmatprep.mubr.f32.mxu0 0.0
        %679 = vmatmul.mubr.f32.gmra.mxu0 %v612
        %v680 = vpop.f32.mrf.mxu0
        %v681 = vadd.f32 %v609, %v680
        %v682 = vpop.f32.mrf.mxu0
        %683 = vdwg.mxu0
        %vm684 = vcmask 130048
        %685 = vst.msk [vmem:[%s336] sm:$0xff] %vm684, %v681
        %s686 = sand.u32 %s230, 1
        %s687 = scalar_lea.sflag [#allocation3], %s686
        %s688 = sand.u32 %s230, 1
        %s689 = smul.addr %s688, 8
        %s690 = scalar_lea.vmem [#allocation2], %s689
        // Predicated region
        $region57: #{tpu_custom_call.1} parent=55 // pred_check
          %p691 = pneg %p240
        $region58: #{tpu_custom_call.1} parent=55 // pred_check_branch
          %693 = sbr.rel (%p691) target = $region60
        $region59: #{tpu_custom_call.1} parent=55 // pred_region
          %s695 = ssub.s32 128, 128
          %696 = vsyncadd %s687, %s695
          %s697 = smul.addr %s23, 128
          %s698 = scalar_lea.hbm %s9, %s697
          %s700 = sshll.u32 %s690, 4
          %s701 = int_to_ptr.vmem [resolvable:$true] %s700
          %703 = dma.vmem_to_hbm [thread:$0]  %s701, 128, %s698, %s687
        $region60: #{tpu_custom_call.1} parent=55 // pred_fallthru
          _
      $region56: #{tpu_custom_call.1} parent=5 // pred_fallthru
        _
      %p704 = scmp.le.s32.totalorder 2, %s18
      // Predicated region
      $region61: #{tpu_custom_call.1} parent=5 // pred_check
        %p705 = pneg %p704
      $region62: #{tpu_custom_call.1} parent=5 // pred_check_branch
        %707 = sbr.rel (%p705) target = $region64
      $region63: #{tpu_custom_call.1} parent=5 // pred_region
        %s708 = ssub.s32 %s18, 2
        // Predicated region
        $region65: #{tpu_custom_call.1} parent=63 // pred_check
          %p709 = pneg %p246
        $region66: #{tpu_custom_call.1} parent=63 // pred_check_branch
          %711 = sbr.rel (%p709) target = $region68
        $region67: #{tpu_custom_call.1} parent=63 // pred_region
          %s712 = sand.u32 %s231, 1
          %s713 = scalar_lea.sflag [#allocation3], %s712
          %s714 = sand.u32 %s231, 1
          %s715 = smul.addr %s714, 8
          %s716 = scalar_lea.vmem [#allocation2], %s715
          %717 = dma.done %s713, 128
        $region68: #{tpu_custom_call.1} parent=63 // pred_fallthru
          _
      $region64: #{tpu_custom_call.1} parent=5 // pred_fallthru
        _
    $region6: #{tpu_custom_call.1} parent=1 // loop_footer
      %s22 = sadd.s32 1, %s18
    $region7: #{tpu_custom_call.1} parent=1 // loop_footer_branch
      %17 = sbr.rel target = $region3
    $region8: #{tpu_custom_call.1} parent=1 // loop_exit
      _
    %718 = vsyncpa [#allocation3], 1
    %s719 = scalar_lea.sflag [#allocation3], 1
    %720 = vsyncpa %s719, 1

</llo_original>
